<compile_context>
chip_gen: v7x
topology: tpu7x:2x2x1
jax: 0.10.0
libtpu: 0.0.40
codegen_flags: <defaults>
</compile_context>

<pallas_src>
import functools

import jax
import jax.numpy as jnp
import numpy as np
from jax.experimental import pallas as pl
from jax.experimental.pallas import tpu as pltpu

LANE = 128


def _round_up(n, m):
    return ((n + m - 1) // m) * m


def _pad_w(w, rows, cols):
    """Zero-pad a (in, out) weight to (rows, cols) and cast to bf16."""
    return jnp.pad(w, ((0, rows - w.shape[0]), (0, cols - w.shape[1]))
                   ).astype(jnp.bfloat16)


def _pad_b(b, cols):
    """Zero-pad a (out,) bias to a (1, cols) f32 row (sublane-broadcast add)."""
    return jnp.pad(b, (0, cols - b.shape[0])).reshape(1, cols).astype(jnp.float32)


def _actor_critic_kernel(*refs, n_pol, n_q, action_scale, with_a):
    """Fused ActorCritic forward on one batch tile.

    refs = (x [, a],
            pol_w0, pol_b0, ..., pol_w{n_pol-1}, pol_b{n_pol-1},
            q_wx, q_wa, q_b0, q_w1, q_b1, ..., q_w{n_q-1}, q_b{n_q-1},
            pi_out [, q_out], q_pi_out)
    """
    i = 0
    x_ref = refs[i]; i += 1
    a_ref = None
    if with_a:
        a_ref = refs[i]; i += 1
    pol = refs[i:i + 2 * n_pol]; i += 2 * n_pol
    qwx, qwa, qb0 = refs[i], refs[i + 1], refs[i + 2]; i += 3
    qrest = refs[i:i + 2 * (n_q - 1)]; i += 2 * (n_q - 1)
    pi_ref = refs[i]; i += 1
    q_ref = None
    if with_a:
        q_ref = refs[i]; i += 1
    qpi_ref = refs[i]

    def mxu_dot(act, w_ref):
        # bf16 operands on the MXU, f32 accumulation.
        return jnp.dot(act.astype(jnp.bfloat16), w_ref[...],
                       preferred_element_type=jnp.float32)

    x = x_ref[...]

    # ---- policy MLP: relu hidden layers, tanh * action_scale output ----
    h = x
    for l in range(n_pol):
        z = mxu_dot(h, pol[2 * l]) + pol[2 * l + 1][...]
        if l < n_pol - 1:
            h = jnp.maximum(z, 0.0)
        else:
            h = jnp.tanh(z) * action_scale
    pi = h
    pi_ref[...] = pi.astype(pi_ref.dtype)

    # ---- q MLP (first layer split into x / action parts) ----
    def q_head(act_in):
        hq = jnp.maximum(mxu_dot(x, qwx) + mxu_dot(act_in, qwa) + qb0[...], 0.0)
        for l in range(n_q - 1):
            z = mxu_dot(hq, qrest[2 * l]) + qrest[2 * l + 1][...]
            hq = jnp.maximum(z, 0.0) if l < n_q - 2 else z
        return hq

    qpi_ref[...] = q_head(pi).astype(qpi_ref.dtype)
    if with_a:
        q_ref[...] = q_head(a_ref[...]).astype(q_ref.dtype)


class ActorCriticPallas:
    """Mirrors firedup.algos.ddpg.core.ActorCritic forward semantics."""

    def __init__(self, key, in_features, action_dim, action_scale,
                 hidden_sizes=(400, 300)):
        assert len(hidden_sizes) >= 1
        self.in_features = int(in_features)
        self.action_dim = int(action_dim)
        self.action_scale = float(action_scale)

        hs = list(hidden_sizes)
        self.in_p = _round_up(self.in_features, LANE)
        self.act_p = _round_up(self.action_dim, LANE)
        self.hid_p = [_round_up(h, LANE) for h in hs]
        self.qo_p = LANE                       # scalar q padded to a lane-dense slab
        self.n_pol = len(hs) + 1
        self.n_q = len(hs) + 1

        def linear(key, fan_in, fan_out):
            # PyTorch nn.Linear default: U(-1/sqrt(fan_in), 1/sqrt(fan_in));
            # bias zeroed (as the module does with nn.init.zeros_).
            key, sub = jax.random.split(key)
            bound = 1.0 / np.sqrt(fan_in)
            w = jax.random.uniform(sub, (fan_in, fan_out), jnp.float32,
                                   minval=-bound, maxval=bound)
            b = jnp.zeros((fan_out,), jnp.float32)
            return key, w, b

        # ---- policy MLP params: in -> hs... -> action_dim ----
        pol_sizes = [self.in_features] + hs + [self.action_dim]
        pol_pad = [self.in_p] + self.hid_p + [self.act_p]
        pol_flat, ref_policy = [], []
        for i in range(len(pol_sizes) - 1):
            key, w, b = linear(key, pol_sizes[i], pol_sizes[i + 1])
            ref_policy.append((w, b))
            pol_flat.append(_pad_w(w, pol_pad[i], pol_pad[i + 1]))
            pol_flat.append(_pad_b(b, pol_pad[i + 1]))

        # ---- q MLP params: (in + act) -> hs... -> 1, first layer split ----
        key, w0, b0 = linear(key, self.in_features + self.action_dim, hs[0])
        q_flat = [_pad_w(w0[:self.in_features], self.in_p, self.hid_p[0]),
                  _pad_w(w0[self.in_features:], self.act_p, self.hid_p[0]),
                  _pad_b(b0, self.hid_p[0])]
        ref_q = [(w0, b0)]
        q_sizes = hs + [1]
        q_pad = self.hid_p + [self.qo_p]
        for i in range(len(q_sizes) - 1):
            key, w, b = linear(key, q_sizes[i], q_sizes[i + 1])
            ref_q.append((w, b))
            q_flat.append(_pad_w(w, q_pad[i], q_pad[i + 1]))
            q_flat.append(_pad_b(b, q_pad[i + 1]))

        self.flat_params = pol_flat + q_flat
        self.ref_policy = ref_policy          # unpadded f32, for reference check
        self.ref_q = ref_q

    # ---------- cost hint ----------
    def _cost(self, batch, with_a):
        dims_pol = [self.in_p] + self.hid_p + [self.act_p]
        dims_q = [self.in_p + self.act_p] + self.hid_p + [self.qo_p]
        pol_mac = sum(dims_pol[i] * dims_pol[i + 1]
                      for i in range(len(dims_pol) - 1))
        q_mac = sum(dims_q[i] * dims_q[i + 1]
                    for i in range(len(dims_q) - 1))
        n_q_evals = 2 if with_a else 1
        flops = 2 * batch * (pol_mac + n_q_evals * q_mac)
        transcendentals = batch * self.act_p
        param_bytes = sum(int(np.prod(p.shape)) * p.dtype.itemsize
                          for p in self.flat_params)
        io_elems = batch * (self.in_p + (self.act_p if with_a else 0)
                            + self.act_p + n_q_evals * self.qo_p)
        return pl.CostEstimate(flops=int(flops),
                               transcendentals=int(transcendentals),
                               bytes_accessed=int(param_bytes + 4 * io_elems))

    # ---------- forward ----------
    def __call__(self, x, a=None):
        B = x.shape[0]
        with_a = a is not None

        # Batch tile: multiple of the f32 sublane (8), capped at 256.
        TB = min(256, _round_up(max(B, 1), 8))
        BP = _round_up(B, TB)

        f32 = jnp.float32
        xp = jnp.pad(x.astype(f32),
                     ((0, BP - B), (0, self.in_p - self.in_features)))
        inputs = [xp]
        if with_a:
            ap = jnp.pad(a.astype(f32),
                         ((0, BP - B), (0, self.act_p - self.action_dim)))
            inputs.append(ap)
        inputs.extend(self.flat_params)

        def row_spec(d):
            return pl.BlockSpec((TB, d), lambda i: (i, 0))

        # Weights/biases: full-array block, constant index_map -> VMEM-resident
        # across grid iterations (no re-DMA).
        in_specs = [row_spec(self.in_p)]
        if with_a:
            in_specs.append(row_spec(self.act_p))
        in_specs += [pl.BlockSpec(p.shape, lambda i: (0, 0))
                     for p in self.flat_params]

        if with_a:
            out_shape = (jax.ShapeDtypeStruct((BP, self.act_p), f32),
                         jax.ShapeDtypeStruct((BP, self.qo_p), f32),
                         jax.ShapeDtypeStruct((BP, self.qo_p), f32))
            out_specs = (row_spec(self.act_p), row_spec(self.qo_p),
                         row_spec(self.qo_p))
        else:
            out_shape = (jax.ShapeDtypeStruct((BP, self.act_p), f32),
                         jax.ShapeDtypeStruct((BP, self.qo_p), f32))
            out_specs = (row_spec(self.act_p), row_spec(self.qo_p))

        kernel = functools.partial(
            _actor_critic_kernel,
            n_pol=self.n_pol, n_q=self.n_q,
            action_scale=self.action_scale, with_a=with_a)

        outs = pl.pallas_call(
            kernel,
            grid=(BP // TB,),
            in_specs=in_specs,
            out_specs=out_specs,
            out_shape=out_shape,
            compiler_params=pltpu.CompilerParams(
                dimension_semantics=("parallel",),      # megacore on v7x
                vmem_limit_bytes=48 * 1024 * 1024),
            cost_estimate=self._cost(BP, with_a),
        )(*inputs)

        if with_a:
            pi_p, q_p, qpi_p = outs
            pi = pi_p[:B, :self.action_dim]
            q = q_p[:B, 0]          # intended last-axis squeeze: (B, 1) -> (B,)
            q_pi = qpi_p[:B, 0]
            return pi, q, q_pi
        pi_p, qpi_p = outs
        return pi_p[:B, :self.action_dim], qpi_p[:B, 0]


# ---------------- pure-JAX reference (unpadded f32 params) ----------------
def _reference_forward(ac, x, a):
    def mlp(inp, params, out_tanh, scale):
        h = inp
        for i, (w, b) in enumerate(params):
            z = h @ w + b
            if i < len(params) - 1:
                h = jnp.maximum(z, 0.0)
            else:
                h = (jnp.tanh(z) if out_tanh else z) * scale
        return h

    pi = mlp(x, ac.ref_policy, True, ac.action_scale)
    q_pi = mlp(jnp.concatenate([x, pi], axis=1), ac.ref_q, False, 1.0)[:, 0]
    q = mlp(jnp.concatenate([x, a], axis=1), ac.ref_q, False, 1.0)[:, 0]
    return pi, q, q_pi


if __name__ == "__main__":
    # Small shapes: batch=2, obs dim=16, action dim=4, hidden=(32, 32).
    batch = 2
    in_features = 16
    action_dim = 4
    action_scale = 2.0
    hidden_sizes = (32, 32)

    key = jax.random.PRNGKey(0)
    key, kx, ka, kp = jax.random.split(key, 4)
    x = jax.random.normal(kx, (batch, in_features), jnp.float32)
    a = jax.random.normal(ka, (batch, action_dim), jnp.float32)

    ac = ActorCriticPallas(kp, in_features, action_dim, action_scale,
                           hidden_sizes=hidden_sizes)

    pi, q, q_pi = ac(x, a)
    jax.block_until_ready((pi, q, q_pi))

    assert pi.shape == (batch, action_dim)
    assert q.shape == (batch,)
    assert q_pi.shape == (batch,)
    assert bool(jnp.all(jnp.abs(pi) <= action_scale + 1e-5))

    # Numerical check vs. plain-JAX reference (loose tol: weights are bf16).
    pi_r, q_r, qpi_r = _reference_forward(ac, x, a)
    np.testing.assert_allclose(np.asarray(pi), np.asarray(pi_r),
                               rtol=0.1, atol=0.1)
    np.testing.assert_allclose(np.asarray(q), np.asarray(q_r),
                               rtol=0.1, atol=0.1)
    np.testing.assert_allclose(np.asarray(q_pi), np.asarray(qpi_r),
                               rtol=0.1, atol=0.1)

    # Also exercise the a=None path: returns (pi, q_pi).
    pi2, q_pi2 = ac(x)
    jax.block_until_ready((pi2, q_pi2))
    assert pi2.shape == (batch, action_dim)
    assert q_pi2.shape == (batch,)

    print("KERNEL_OK")
</pallas_src>

<mosaic_0001>
module attributes {stable_mosaic.version = 11 : i64} {
  func.func @_actor_critic_kernel(%arg0: i32, %arg1: memref<8x128xf32, #tpu.memory_space<vmem>>, %arg2: memref<8x128xf32, #tpu.memory_space<vmem>>, %arg3: memref<128x128xbf16, #tpu.memory_space<vmem>>, %arg4: memref<1x128xf32, #tpu.memory_space<vmem>>, %arg5: memref<128x128xbf16, #tpu.memory_space<vmem>>, %arg6: memref<1x128xf32, #tpu.memory_space<vmem>>, %arg7: memref<128x128xbf16, #tpu.memory_space<vmem>>, %arg8: memref<1x128xf32, #tpu.memory_space<vmem>>, %arg9: memref<128x128xbf16, #tpu.memory_space<vmem>>, %arg10: memref<128x128xbf16, #tpu.memory_space<vmem>>, %arg11: memref<1x128xf32, #tpu.memory_space<vmem>>, %arg12: memref<128x128xbf16, #tpu.memory_space<vmem>>, %arg13: memref<1x128xf32, #tpu.memory_space<vmem>>, %arg14: memref<128x128xbf16, #tpu.memory_space<vmem>>, %arg15: memref<1x128xf32, #tpu.memory_space<vmem>>, %arg16: memref<8x128xf32, #tpu.memory_space<vmem>>, %arg17: memref<8x128xf32, #tpu.memory_space<vmem>>, %arg18: memref<8x128xf32, #tpu.memory_space<vmem>>) attributes {dimension_semantics = [#tpu.dimension_semantics<parallel>], iteration_bounds = array<i64: 1>, scalar_prefetch = 0 : i64, scratch_operands = 0 : i64, tpu.core_type = #tpu.core_type<tc>, window_params = [{transform_indices = @transform_0, window_bounds = array<i64: 8, 128>}, {transform_indices = @transform_1, window_bounds = array<i64: 8, 128>}, {pipeline_mode = #tpu.pipeline_mode<synchronous>, transform_indices = @transform_2, window_bounds = array<i64: 128, 128>}, {pipeline_mode = #tpu.pipeline_mode<synchronous>, transform_indices = @transform_3, window_bounds = array<i64: 1, 128>}, {pipeline_mode = #tpu.pipeline_mode<synchronous>, transform_indices = @transform_4, window_bounds = array<i64: 128, 128>}, {pipeline_mode = #tpu.pipeline_mode<synchronous>, transform_indices = @transform_5, window_bounds = array<i64: 1, 128>}, {pipeline_mode = #tpu.pipeline_mode<synchronous>, transform_indices = @transform_6, window_bounds = array<i64: 128, 128>}, {pipeline_mode = #tpu.pipeline_mode<synchronous>, transform_indices = @transform_7, window_bounds = array<i64: 1, 128>}, {pipeline_mode = #tpu.pipeline_mode<synchronous>, transform_indices = @transform_8, window_bounds = array<i64: 128, 128>}, {pipeline_mode = #tpu.pipeline_mode<synchronous>, transform_indices = @transform_9, window_bounds = array<i64: 128, 128>}, {pipeline_mode = #tpu.pipeline_mode<synchronous>, transform_indices = @transform_10, window_bounds = array<i64: 1, 128>}, {pipeline_mode = #tpu.pipeline_mode<synchronous>, transform_indices = @transform_11, window_bounds = array<i64: 128, 128>}, {pipeline_mode = #tpu.pipeline_mode<synchronous>, transform_indices = @transform_12, window_bounds = array<i64: 1, 128>}, {pipeline_mode = #tpu.pipeline_mode<synchronous>, transform_indices = @transform_13, window_bounds = array<i64: 128, 128>}, {pipeline_mode = #tpu.pipeline_mode<synchronous>, transform_indices = @transform_14, window_bounds = array<i64: 1, 128>}, {transform_indices = @transform_15, window_bounds = array<i64: 8, 128>}, {transform_indices = @transform_16, window_bounds = array<i64: 8, 128>}, {transform_indices = @transform_17, window_bounds = array<i64: 8, 128>}]} {
    %c0 = arith.constant 0 : index
    %c0_0 = arith.constant 0 : index
    %0 = vector.load %arg1[%c0, %c0_0] : memref<8x128xf32, #tpu.memory_space<vmem>>, vector<8x128xf32>
    %1 = arith.truncf %0 : vector<8x128xf32> to vector<8x128xbf16>
    %c0_1 = arith.constant 0 : index
    %c0_2 = arith.constant 0 : index
    %2 = vector.load %arg3[%c0_1, %c0_2] : memref<128x128xbf16, #tpu.memory_space<vmem>>, vector<128x128xbf16>
    %cst = arith.constant dense<0.000000e+00> : vector<8x128xf32>
    %3 = tpu.matmul %1, %2, %cst {dimension_numbers = #tpu.dot_dimension_numbers<[1], [0], [0], [1], [0, 0, 1, 1], [], []>} : vector<8x128xbf16>, vector<128x128xbf16>, vector<8x128xf32> -> vector<8x128xf32>
    %c0_3 = arith.constant 0 : index
    %c0_4 = arith.constant 0 : index
    %4 = vector.load %arg4[%c0_3, %c0_4] : memref<1x128xf32, #tpu.memory_space<vmem>>, vector<1x128xf32>
    %5 = vector.broadcast %4 : vector<1x128xf32> to vector<8x128xf32>
    %6 = arith.addf %3, %5 : vector<8x128xf32>
    %cst_5 = arith.constant 0.000000e+00 : f32
    %7 = vector.broadcast %cst_5 : f32 to vector<8x128xf32>
    %8 = arith.maximumf %6, %7 : vector<8x128xf32>
    %9 = arith.truncf %8 : vector<8x128xf32> to vector<8x128xbf16>
    %c0_6 = arith.constant 0 : index
    %c0_7 = arith.constant 0 : index
    %10 = vector.load %arg5[%c0_6, %c0_7] : memref<128x128xbf16, #tpu.memory_space<vmem>>, vector<128x128xbf16>
    %cst_8 = arith.constant dense<0.000000e+00> : vector<8x128xf32>
    %11 = tpu.matmul %9, %10, %cst_8 {dimension_numbers = #tpu.dot_dimension_numbers<[1], [0], [0], [1], [0, 0, 1, 1], [], []>} : vector<8x128xbf16>, vector<128x128xbf16>, vector<8x128xf32> -> vector<8x128xf32>
    %c0_9 = arith.constant 0 : index
    %c0_10 = arith.constant 0 : index
    %12 = vector.load %arg6[%c0_9, %c0_10] : memref<1x128xf32, #tpu.memory_space<vmem>>, vector<1x128xf32>
    %13 = vector.broadcast %12 : vector<1x128xf32> to vector<8x128xf32>
    %14 = arith.addf %11, %13 : vector<8x128xf32>
    %cst_11 = arith.constant 0.000000e+00 : f32
    %15 = vector.broadcast %cst_11 : f32 to vector<8x128xf32>
    %16 = arith.maximumf %14, %15 : vector<8x128xf32>
    %17 = arith.truncf %16 : vector<8x128xf32> to vector<8x128xbf16>
    %c0_12 = arith.constant 0 : index
    %c0_13 = arith.constant 0 : index
    %18 = vector.load %arg7[%c0_12, %c0_13] : memref<128x128xbf16, #tpu.memory_space<vmem>>, vector<128x128xbf16>
    %cst_14 = arith.constant dense<0.000000e+00> : vector<8x128xf32>
    %19 = tpu.matmul %17, %18, %cst_14 {dimension_numbers = #tpu.dot_dimension_numbers<[1], [0], [0], [1], [0, 0, 1, 1], [], []>} : vector<8x128xbf16>, vector<128x128xbf16>, vector<8x128xf32> -> vector<8x128xf32>
    %c0_15 = arith.constant 0 : index
    %c0_16 = arith.constant 0 : index
    %20 = vector.load %arg8[%c0_15, %c0_16] : memref<1x128xf32, #tpu.memory_space<vmem>>, vector<1x128xf32>
    %21 = vector.broadcast %20 : vector<1x128xf32> to vector<8x128xf32>
    %22 = arith.addf %19, %21 : vector<8x128xf32>
    %23 = math.tanh %22 : vector<8x128xf32>
    %cst_17 = arith.constant 2.000000e+00 : f32
    %24 = vector.broadcast %cst_17 : f32 to vector<8x128xf32>
    %25 = arith.mulf %23, %24 : vector<8x128xf32>
    %c0_18 = arith.constant 0 : index
    %c0_19 = arith.constant 0 : index
    %26 = vector.load %arg16[%c0_18, %c0_19] : memref<8x128xf32, #tpu.memory_space<vmem>>, vector<8x128xf32>
    tpu.vector_store %arg16[%c0_18, %c0_19], %25 {strides = array<i32>} : memref<8x128xf32, #tpu.memory_space<vmem>>, vector<8x128xf32>,
    %27 = arith.truncf %0 : vector<8x128xf32> to vector<8x128xbf16>
    %c0_20 = arith.constant 0 : index
    %c0_21 = arith.constant 0 : index
    %28 = vector.load %arg9[%c0_20, %c0_21] : memref<128x128xbf16, #tpu.memory_space<vmem>>, vector<128x128xbf16>
    %cst_22 = arith.constant dense<0.000000e+00> : vector<8x128xf32>
    %29 = tpu.matmul %27, %28, %cst_22 {dimension_numbers = #tpu.dot_dimension_numbers<[1], [0], [0], [1], [0, 0, 1, 1], [], []>} : vector<8x128xbf16>, vector<128x128xbf16>, vector<8x128xf32> -> vector<8x128xf32>
    %30 = arith.truncf %25 : vector<8x128xf32> to vector<8x128xbf16>
    %c0_23 = arith.constant 0 : index
    %c0_24 = arith.constant 0 : index
    %31 = vector.load %arg10[%c0_23, %c0_24] : memref<128x128xbf16, #tpu.memory_space<vmem>>, vector<128x128xbf16>
    %cst_25 = arith.constant dense<0.000000e+00> : vector<8x128xf32>
    %32 = tpu.matmul %30, %31, %cst_25 {dimension_numbers = #tpu.dot_dimension_numbers<[1], [0], [0], [1], [0, 0, 1, 1], [], []>} : vector<8x128xbf16>, vector<128x128xbf16>, vector<8x128xf32> -> vector<8x128xf32>
    %33 = arith.addf %29, %32 : vector<8x128xf32>
    %c0_26 = arith.constant 0 : index
    %c0_27 = arith.constant 0 : index
    %34 = vector.load %arg11[%c0_26, %c0_27] : memref<1x128xf32, #tpu.memory_space<vmem>>, vector<1x128xf32>
    %35 = vector.broadcast %34 : vector<1x128xf32> to vector<8x128xf32>
    %36 = arith.addf %33, %35 : vector<8x128xf32>
    %cst_28 = arith.constant 0.000000e+00 : f32
    %37 = vector.broadcast %cst_28 : f32 to vector<8x128xf32>
    %38 = arith.maximumf %36, %37 : vector<8x128xf32>
    %39 = arith.truncf %38 : vector<8x128xf32> to vector<8x128xbf16>
    %c0_29 = arith.constant 0 : index
    %c0_30 = arith.constant 0 : index
    %40 = vector.load %arg12[%c0_29, %c0_30] : memref<128x128xbf16, #tpu.memory_space<vmem>>, vector<128x128xbf16>
    %cst_31 = arith.constant dense<0.000000e+00> : vector<8x128xf32>
    %41 = tpu.matmul %39, %40, %cst_31 {dimension_numbers = #tpu.dot_dimension_numbers<[1], [0], [0], [1], [0, 0, 1, 1], [], []>} : vector<8x128xbf16>, vector<128x128xbf16>, vector<8x128xf32> -> vector<8x128xf32>
    %c0_32 = arith.constant 0 : index
    %c0_33 = arith.constant 0 : index
    %42 = vector.load %arg13[%c0_32, %c0_33] : memref<1x128xf32, #tpu.memory_space<vmem>>, vector<1x128xf32>
    %43 = vector.broadcast %42 : vector<1x128xf32> to vector<8x128xf32>
    %44 = arith.addf %41, %43 : vector<8x128xf32>
    %cst_34 = arith.constant 0.000000e+00 : f32
    %45 = vector.broadcast %cst_34 : f32 to vector<8x128xf32>
    %46 = arith.maximumf %44, %45 : vector<8x128xf32>
    %47 = arith.truncf %46 : vector<8x128xf32> to vector<8x128xbf16>
    %c0_35 = arith.constant 0 : index
    %c0_36 = arith.constant 0 : index
    %48 = vector.load %arg14[%c0_35, %c0_36] : memref<128x128xbf16, #tpu.memory_space<vmem>>, vector<128x128xbf16>
    %cst_37 = arith.constant dense<0.000000e+00> : vector<8x128xf32>
    %49 = tpu.matmul %47, %48, %cst_37 {dimension_numbers = #tpu.dot_dimension_numbers<[1], [0], [0], [1], [0, 0, 1, 1], [], []>} : vector<8x128xbf16>, vector<128x128xbf16>, vector<8x128xf32> -> vector<8x128xf32>
    %c0_38 = arith.constant 0 : index
    %c0_39 = arith.constant 0 : index
    %50 = vector.load %arg15[%c0_38, %c0_39] : memref<1x128xf32, #tpu.memory_space<vmem>>, vector<1x128xf32>
    %51 = vector.broadcast %50 : vector<1x128xf32> to vector<8x128xf32>
    %52 = arith.addf %49, %51 : vector<8x128xf32>
    %c0_40 = arith.constant 0 : index
    %c0_41 = arith.constant 0 : index
    %53 = vector.load %arg18[%c0_40, %c0_41] : memref<8x128xf32, #tpu.memory_space<vmem>>, vector<8x128xf32>
    tpu.vector_store %arg18[%c0_40, %c0_41], %52 {strides = array<i32>} : memref<8x128xf32, #tpu.memory_space<vmem>>, vector<8x128xf32>,
    %c0_42 = arith.constant 0 : index
    %c0_43 = arith.constant 0 : index
    %54 = vector.load %arg2[%c0_42, %c0_43] : memref<8x128xf32, #tpu.memory_space<vmem>>, vector<8x128xf32>
    %55 = arith.truncf %0 : vector<8x128xf32> to vector<8x128xbf16>
    %c0_44 = arith.constant 0 : index
    %c0_45 = arith.constant 0 : index
    %56 = vector.load %arg9[%c0_44, %c0_45] : memref<128x128xbf16, #tpu.memory_space<vmem>>, vector<128x128xbf16>
    %cst_46 = arith.constant dense<0.000000e+00> : vector<8x128xf32>
    %57 = tpu.matmul %55, %56, %cst_46 {dimension_numbers = #tpu.dot_dimension_numbers<[1], [0], [0], [1], [0, 0, 1, 1], [], []>} : vector<8x128xbf16>, vector<128x128xbf16>, vector<8x128xf32> -> vector<8x128xf32>
    %58 = arith.truncf %54 : vector<8x128xf32> to vector<8x128xbf16>
    %c0_47 = arith.constant 0 : index
    %c0_48 = arith.constant 0 : index
    %59 = vector.load %arg10[%c0_47, %c0_48] : memref<128x128xbf16, #tpu.memory_space<vmem>>, vector<128x128xbf16>
    %cst_49 = arith.constant dense<0.000000e+00> : vector<8x128xf32>
    %60 = tpu.matmul %58, %59, %cst_49 {dimension_numbers = #tpu.dot_dimension_numbers<[1], [0], [0], [1], [0, 0, 1, 1], [], []>} : vector<8x128xbf16>, vector<128x128xbf16>, vector<8x128xf32> -> vector<8x128xf32>
    %61 = arith.addf %57, %60 : vector<8x128xf32>
    %c0_50 = arith.constant 0 : index
    %c0_51 = arith.constant 0 : index
    %62 = vector.load %arg11[%c0_50, %c0_51] : memref<1x128xf32, #tpu.memory_space<vmem>>, vector<1x128xf32>
    %63 = vector.broadcast %62 : vector<1x128xf32> to vector<8x128xf32>
    %64 = arith.addf %61, %63 : vector<8x128xf32>
    %cst_52 = arith.constant 0.000000e+00 : f32
    %65 = vector.broadcast %cst_52 : f32 to vector<8x128xf32>
    %66 = arith.maximumf %64, %65 : vector<8x128xf32>
    %67 = arith.truncf %66 : vector<8x128xf32> to vector<8x128xbf16>
    %c0_53 = arith.constant 0 : index
    %c0_54 = arith.constant 0 : index
    %68 = vector.load %arg12[%c0_53, %c0_54] : memref<128x128xbf16, #tpu.memory_space<vmem>>, vector<128x128xbf16>
    %cst_55 = arith.constant dense<0.000000e+00> : vector<8x128xf32>
    %69 = tpu.matmul %67, %68, %cst_55 {dimension_numbers = #tpu.dot_dimension_numbers<[1], [0], [0], [1], [0, 0, 1, 1], [], []>} : vector<8x128xbf16>, vector<128x128xbf16>, vector<8x128xf32> -> vector<8x128xf32>
    %c0_56 = arith.constant 0 : index
    %c0_57 = arith.constant 0 : index
    %70 = vector.load %arg13[%c0_56, %c0_57] : memref<1x128xf32, #tpu.memory_space<vmem>>, vector<1x128xf32>
    %71 = vector.broadcast %70 : vector<1x128xf32> to vector<8x128xf32>
    %72 = arith.addf %69, %71 : vector<8x128xf32>
    %cst_58 = arith.constant 0.000000e+00 : f32
    %73 = vector.broadcast %cst_58 : f32 to vector<8x128xf32>
    %74 = arith.maximumf %72, %73 : vector<8x128xf32>
    %75 = arith.truncf %74 : vector<8x128xf32> to vector<8x128xbf16>
    %c0_59 = arith.constant 0 : index
    %c0_60 = arith.constant 0 : index
    %76 = vector.load %arg14[%c0_59, %c0_60] : memref<128x128xbf16, #tpu.memory_space<vmem>>, vector<128x128xbf16>
    %cst_61 = arith.constant dense<0.000000e+00> : vector<8x128xf32>
    %77 = tpu.matmul %75, %76, %cst_61 {dimension_numbers = #tpu.dot_dimension_numbers<[1], [0], [0], [1], [0, 0, 1, 1], [], []>} : vector<8x128xbf16>, vector<128x128xbf16>, vector<8x128xf32> -> vector<8x128xf32>
    %c0_62 = arith.constant 0 : index
    %c0_63 = arith.constant 0 : index
    %78 = vector.load %arg15[%c0_62, %c0_63] : memref<1x128xf32, #tpu.memory_space<vmem>>, vector<1x128xf32>
    %79 = vector.broadcast %78 : vector<1x128xf32> to vector<8x128xf32>
    %80 = arith.addf %77, %79 : vector<8x128xf32>
    %c0_64 = arith.constant 0 : index
    %c0_65 = arith.constant 0 : index
    %81 = vector.load %arg17[%c0_64, %c0_65] : memref<8x128xf32, #tpu.memory_space<vmem>>, vector<8x128xf32>
    tpu.vector_store %arg17[%c0_64, %c0_65], %80 {strides = array<i32>} : memref<8x128xf32, #tpu.memory_space<vmem>>, vector<8x128xf32>,
    return
  }
  func.func @transform_0(%arg0: i32) -> (i32, i32) {
    %c0_i32 = arith.constant 0 : i32
    %c0_i32_0 = arith.constant 0 : i32
    return %arg0, %c0_i32 : i32, i32
  }
  func.func @transform_1(%arg0: i32) -> (i32, i32) {
    %c0_i32 = arith.constant 0 : i32
    %c0_i32_0 = arith.constant 0 : i32
    return %arg0, %c0_i32 : i32, i32
  }
  func.func @transform_2(%arg0: i32) -> (i32, i32) {
    %c0_i32 = arith.constant 0 : i32
    %c0_i32_0 = arith.constant 0 : i32
    %c0_i32_1 = arith.constant 0 : i32
    return %c0_i32, %c0_i32_0 : i32, i32
  }
  func.func @transform_3(%arg0: i32) -> (i32, i32) {
    %c0_i32 = arith.constant 0 : i32
    %c0_i32_0 = arith.constant 0 : i32
    %c0_i32_1 = arith.constant 0 : i32
    return %c0_i32, %c0_i32_0 : i32, i32
  }
  func.func @transform_4(%arg0: i32) -> (i32, i32) {
    %c0_i32 = arith.constant 0 : i32
    %c0_i32_0 = arith.constant 0 : i32
    %c0_i32_1 = arith.constant 0 : i32
    return %c0_i32, %c0_i32_0 : i32, i32
  }
  func.func @transform_5(%arg0: i32) -> (i32, i32) {
    %c0_i32 = arith.constant 0 : i32
    %c0_i32_0 = arith.constant 0 : i32
    %c0_i32_1 = arith.constant 0 : i32
    return %c0_i32, %c0_i32_0 : i32, i32
  }
  func.func @transform_6(%arg0: i32) -> (i32, i32) {
    %c0_i32 = arith.constant 0 : i32
    %c0_i32_0 = arith.constant 0 : i32
    %c0_i32_1 = arith.constant 0 : i32
    return %c0_i32, %c0_i32_0 : i32, i32
  }
  func.func @transform_7(%arg0: i32) -> (i32, i32) {
    %c0_i32 = arith.constant 0 : i32
    %c0_i32_0 = arith.constant 0 : i32
    %c0_i32_1 = arith.constant 0 : i32
    return %c0_i32, %c0_i32_0 : i32, i32
  }
  func.func @transform_8(%arg0: i32) -> (i32, i32) {
    %c0_i32 = arith.constant 0 : i32
    %c0_i32_0 = arith.constant 0 : i32
    %c0_i32_1 = arith.constant 0 : i32
    return %c0_i32, %c0_i32_0 : i32, i32
  }
  func.func @transform_9(%arg0: i32) -> (i32, i32) {
    %c0_i32 = arith.constant 0 : i32
    %c0_i32_0 = arith.constant 0 : i32
    %c0_i32_1 = arith.constant 0 : i32
    return %c0_i32, %c0_i32_0 : i32, i32
  }
  func.func @transform_10(%arg0: i32) -> (i32, i32) {
    %c0_i32 = arith.constant 0 : i32
    %c0_i32_0 = arith.constant 0 : i32
    %c0_i32_1 = arith.constant 0 : i32
    return %c0_i32, %c0_i32_0 : i32, i32
  }
  func.func @transform_11(%arg0: i32) -> (i32, i32) {
    %c0_i32 = arith.constant 0 : i32
    %c0_i32_0 = arith.constant 0 : i32
    %c0_i32_1 = arith.constant 0 : i32
    return %c0_i32, %c0_i32_0 : i32, i32
  }
  func.func @transform_12(%arg0: i32) -> (i32, i32) {
    %c0_i32 = arith.constant 0 : i32
    %c0_i32_0 = arith.constant 0 : i32
    %c0_i32_1 = arith.constant 0 : i32
    return %c0_i32, %c0_i32_0 : i32, i32
  }
  func.func @transform_13(%arg0: i32) -> (i32, i32) {
    %c0_i32 = arith.constant 0 : i32
    %c0_i32_0 = arith.constant 0 : i32
    %c0_i32_1 = arith.constant 0 : i32
    return %c0_i32, %c0_i32_0 : i32, i32
  }
  func.func @transform_14(%arg0: i32) -> (i32, i32) {
    %c0_i32 = arith.constant 0 : i32
    %c0_i32_0 = arith.constant 0 : i32
    %c0_i32_1 = arith.constant 0 : i32
    return %c0_i32, %c0_i32_0 : i32, i32
  }
  func.func @transform_15(%arg0: i32) -> (i32, i32) {
    %c0_i32 = arith.constant 0 : i32
    %c0_i32_0 = arith.constant 0 : i32
    return %arg0, %c0_i32 : i32, i32
  }
  func.func @transform_16(%arg0: i32) -> (i32, i32) {
    %c0_i32 = arith.constant 0 : i32
    %c0_i32_0 = arith.constant 0 : i32
    return %arg0, %c0_i32 : i32, i32
  }
  func.func @transform_17(%arg0: i32) -> (i32, i32) {
    %c0_i32 = arith.constant 0 : i32
    %c0_i32_0 = arith.constant 0 : i32
    return %arg0, %c0_i32 : i32, i32
  }
}

</mosaic_0001>

<llo_original>
// kernel: tpu_custom_call.1
$region0: #{tpu_custom_call.1}
  #allocation0 [shape = 'u32[]', space=smem, size = 0x4, offset = 0x4, fixed_abs, tag = 'smem constant byte address 0x4 - core index']
  #allocation1 [shape = 'u32[144,128]{1,0:T(1,128)}', space=vmem, size = 0x12000, scoped, tag = 'internal scratch']
  %s0 = inlined_call_operand.hbm [shape: f32[8,128], index: 0, kind: input, shape index: {}]
  %s1 = inlined_call_operand.hbm [shape: f32[8,128], index: 1, kind: input, shape index: {}]
  %s2 = inlined_call_operand.hbm [shape: bf16[128,128], index: 2, kind: input, shape index: {}]
  %s3 = inlined_call_operand.vmem [shape: f32[1,128], index: 3, kind: input, shape index: {}]
  %s4 = inlined_call_operand.hbm [shape: bf16[128,128], index: 4, kind: input, shape index: {}]
  %s5 = inlined_call_operand.vmem [shape: f32[1,128], index: 5, kind: input, shape index: {}]
  %s6 = inlined_call_operand.hbm [shape: bf16[128,128], index: 6, kind: input, shape index: {}]
  %s7 = inlined_call_operand.vmem [shape: f32[1,128], index: 7, kind: input, shape index: {}]
  %s8 = inlined_call_operand.hbm [shape: bf16[128,128], index: 8, kind: input, shape index: {}]
  %s9 = inlined_call_operand.hbm [shape: bf16[128,128], index: 9, kind: input, shape index: {}]
  %s10 = inlined_call_operand.vmem [shape: f32[1,128], index: 10, kind: input, shape index: {}]
  %s11 = inlined_call_operand.hbm [shape: bf16[128,128], index: 11, kind: input, shape index: {}]
  %s12 = inlined_call_operand.vmem [shape: f32[1,128], index: 12, kind: input, shape index: {}]
  %s13 = inlined_call_operand.hbm [shape: bf16[128,128], index: 13, kind: input, shape index: {}]
  %s14 = inlined_call_operand.vmem [shape: f32[1,128], index: 14, kind: input, shape index: {}]
  %s15 = inlined_call_operand.hbm [shape: f32[8,128], index: 15, kind: output, shape index: {0}]
  %s16 = inlined_call_operand.hbm [shape: f32[8,128], index: 16, kind: output, shape index: {1}]
  %s17 = inlined_call_operand.hbm [shape: f32[8,128], index: 17, kind: output, shape index: {2}]
  %18 = xla_tuple %s15, %s16, %s17
  %s19 = sld [smem:[#allocation0]]
  $region122: #{tpu_custom_call.1} parent=0
    _
  %s21 = ssub.s32 1, %s19
  %s22 = scalar_select 0, %s21, %s19
  $region1: #{tpu_custom_call.1} parent=0
    #allocation2 [shape = 'u8[4096]{0}', space=vmem, size = 0x1000, scoped, tag = 'input window, operand 0, single buffered']
    #allocation3 [shape = 's32[1]{0}', space=sflag, size = 0x4, scoped, tag = 'scoped memory for tpu_custom_call.1']
    #allocation4 [shape = 's32[1]{0}', space=sflag, size = 0x4, scoped, tag = 'scoped memory for tpu_custom_call.1']
    #allocation5 [shape = 'u8[4096]{0}', space=vmem, size = 0x1000, scoped, tag = 'input window, operand 1, single buffered']
    #allocation6 [shape = 's32[1]{0}', space=sflag, size = 0x4, scoped, tag = 'scoped memory for tpu_custom_call.1']
    #allocation7 [shape = 'u8[32768]{0}', space=vmem, size = 0x8000, scoped, tag = 'input window, operand 2, single buffered']
    #allocation8 [shape = 'u8[32768]{0}', space=vmem, size = 0x8000, scoped, tag = 'input window, operand 4, single buffered']
    #allocation9 [shape = 's32[1]{0}', space=sflag, size = 0x4, scoped, tag = 'scoped memory for tpu_custom_call.1']
    #allocation10 [shape = 'u8[32768]{0}', space=vmem, size = 0x8000, scoped, tag = 'input window, operand 6, single buffered']
    #allocation11 [shape = 'u8[32768]{0}', space=vmem, size = 0x8000, scoped, tag = 'input window, operand 8, single buffered']
    #allocation12 [shape = 's32[1]{0}', space=sflag, size = 0x4, scoped, tag = 'scoped memory for tpu_custom_call.1']
    #allocation13 [shape = 'u8[32768]{0}', space=vmem, size = 0x8000, scoped, tag = 'input window, operand 9, single buffered']
    #allocation14 [shape = 'u8[32768]{0}', space=vmem, size = 0x8000, scoped, tag = 'input window, operand 11, single buffered']
    #allocation15 [shape = 's32[1]{0}', space=sflag, size = 0x4, scoped, tag = 'scoped memory for tpu_custom_call.1']
    #allocation16 [shape = 'u8[32768]{0}', space=vmem, size = 0x8000, scoped, tag = 'input window, operand 13, single buffered']
    #allocation17 [shape = 'u8[4096]{0}', space=vmem, size = 0x1000, scoped, tag = 'output window, operand 0, single buffered']
    #allocation18 [shape = 'u8[4096]{0}', space=vmem, size = 0x1000, scoped, tag = 'output window, operand 1, single buffered']
    #allocation19 [shape = 's32[1]{0}', space=sflag, size = 0x4, scoped, tag = 'scoped memory for tpu_custom_call.1']
    #allocation20 [shape = 'u8[4096]{0}', space=vmem, size = 0x1000, scoped, tag = 'output window, operand 2, single buffered']
    %23 = vsyncpa [#allocation3], 0
    %24 = vsyncpa [#allocation6], 0
    %25 = vsyncpa [#allocation9], 0
    %26 = vsyncpa [#allocation12], 0
    %27 = vsyncpa [#allocation15], 0
    %28 = vsyncpa [#allocation4], 0
    %29 = vsyncpa [#allocation19], 0
    // Predicated region
    $region2: #{tpu_custom_call.1} parent=1 // pred_check
      _
    $region3: #{tpu_custom_call.1} parent=1 // pred_check_branch
      %31 = sbr.rel (0) target = $region5
    $region4: #{tpu_custom_call.1} parent=1 // pred_region
      %s33 = ssub.s32 128, 128
      %34 = vsyncadd [#allocation3], %s33
      %s36 = sshll.u32 [#allocation2], 4
      %s37 = int_to_ptr.vmem [resolvable:$true] %s36
      %39 = dma.hbm_to_vmem [thread:$0]  %s0, 128, %s37, [#allocation3]
    $region5: #{tpu_custom_call.1} parent=1 // pred_fallthru
      _
    // Predicated region
    $region6: #{tpu_custom_call.1} parent=1 // pred_check
      _
    $region7: #{tpu_custom_call.1} parent=1 // pred_check_branch
      %41 = sbr.rel (0) target = $region9
    $region8: #{tpu_custom_call.1} parent=1 // pred_region
      %s43 = ssub.s32 128, 128
      %44 = vsyncadd [#allocation6], %s43
      %s46 = sshll.u32 [#allocation5], 4
      %s47 = int_to_ptr.vmem [resolvable:$true] %s46
      %49 = dma.hbm_to_vmem [thread:$0]  %s1, 128, %s47, [#allocation6]
    $region9: #{tpu_custom_call.1} parent=1 // pred_fallthru
      _
    // Predicated region
    $region10: #{tpu_custom_call.1} parent=1 // pred_check
      _
    $region11: #{tpu_custom_call.1} parent=1 // pred_check_branch
      %51 = sbr.rel (0) target = $region13
    $region12: #{tpu_custom_call.1} parent=1 // pred_region
      %s53 = ssub.s32 1024, 1024
      %54 = vsyncadd [#allocation6], %s53
      %s55 = sshll.u32 [#allocation7], 4
      %s56 = int_to_ptr.vmem [resolvable:$true] %s55
      %61 = dma.hbm_to_vmem [thread:$0]  %s2, 1024, %s56, [#allocation6], 64, 64, 4
    $region13: #{tpu_custom_call.1} parent=1 // pred_fallthru
      _
    // Predicated region
    $region14: #{tpu_custom_call.1} parent=1 // pred_check
      _
    $region15: #{tpu_custom_call.1} parent=1 // pred_check_branch
      %63 = sbr.rel (0) target = $region17
    $region16: #{tpu_custom_call.1} parent=1 // pred_region
      _
    $region17: #{tpu_custom_call.1} parent=1 // pred_fallthru
      _
    // Predicated region
    $region18: #{tpu_custom_call.1} parent=1 // pred_check
      _
    $region19: #{tpu_custom_call.1} parent=1 // pred_check_branch
      %65 = sbr.rel (0) target = $region21
    $region20: #{tpu_custom_call.1} parent=1 // pred_region
      %s67 = ssub.s32 1024, 1024
      %68 = vsyncadd [#allocation9], %s67
      %s69 = sshll.u32 [#allocation8], 4
      %s70 = int_to_ptr.vmem [resolvable:$true] %s69
      %75 = dma.hbm_to_vmem [thread:$0]  %s4, 1024, %s70, [#allocation9], 64, 64, 4
    $region21: #{tpu_custom_call.1} parent=1 // pred_fallthru
      _
    // Predicated region
    $region22: #{tpu_custom_call.1} parent=1 // pred_check
      _
    $region23: #{tpu_custom_call.1} parent=1 // pred_check_branch
      %77 = sbr.rel (0) target = $region25
    $region24: #{tpu_custom_call.1} parent=1 // pred_region
      _
    $region25: #{tpu_custom_call.1} parent=1 // pred_fallthru
      _
    // Predicated region
    $region26: #{tpu_custom_call.1} parent=1 // pred_check
      _
    $region27: #{tpu_custom_call.1} parent=1 // pred_check_branch
      %79 = sbr.rel (0) target = $region29
    $region28: #{tpu_custom_call.1} parent=1 // pred_region
      %s81 = ssub.s32 1024, 1024
      %82 = vsyncadd [#allocation9], %s81
      %s83 = sshll.u32 [#allocation10], 4
      %s84 = int_to_ptr.vmem [resolvable:$true] %s83
      %89 = dma.hbm_to_vmem [thread:$0]  %s6, 1024, %s84, [#allocation9], 64, 64, 4
    $region29: #{tpu_custom_call.1} parent=1 // pred_fallthru
      _
    // Predicated region
    $region30: #{tpu_custom_call.1} parent=1 // pred_check
      _
    $region31: #{tpu_custom_call.1} parent=1 // pred_check_branch
      %91 = sbr.rel (0) target = $region33
    $region32: #{tpu_custom_call.1} parent=1 // pred_region
      _
    $region33: #{tpu_custom_call.1} parent=1 // pred_fallthru
      _
    // Predicated region
    $region34: #{tpu_custom_call.1} parent=1 // pred_check
      _
    $region35: #{tpu_custom_call.1} parent=1 // pred_check_branch
      %93 = sbr.rel (0) target = $region37
    $region36: #{tpu_custom_call.1} parent=1 // pred_region
      %s95 = ssub.s32 1024, 1024
      %96 = vsyncadd [#allocation12], %s95
      %s97 = sshll.u32 [#allocation11], 4
      %s98 = int_to_ptr.vmem [resolvable:$true] %s97
      %103 = dma.hbm_to_vmem [thread:$0]  %s8, 1024, %s98, [#allocation12], 64, 64, 4
    $region37: #{tpu_custom_call.1} parent=1 // pred_fallthru
      _
    // Predicated region
    $region38: #{tpu_custom_call.1} parent=1 // pred_check
      _
    $region39: #{tpu_custom_call.1} parent=1 // pred_check_branch
      %105 = sbr.rel (0) target = $region41
    $region40: #{tpu_custom_call.1} parent=1 // pred_region
      %s107 = ssub.s32 1024, 1024
      %108 = vsyncadd [#allocation12], %s107
      %s109 = sshll.u32 [#allocation13], 4
      %s110 = int_to_ptr.vmem [resolvable:$true] %s109
      %115 = dma.hbm_to_vmem [thread:$0]  %s9, 1024, %s110, [#allocation12], 64, 64, 4
    $region41: #{tpu_custom_call.1} parent=1 // pred_fallthru
      _
    // Predicated region
    $region42: #{tpu_custom_call.1} parent=1 // pred_check
      _
    $region43: #{tpu_custom_call.1} parent=1 // pred_check_branch
      %117 = sbr.rel (0) target = $region45
    $region44: #{tpu_custom_call.1} parent=1 // pred_region
      _
    $region45: #{tpu_custom_call.1} parent=1 // pred_fallthru
      _
    // Predicated region
    $region46: #{tpu_custom_call.1} parent=1 // pred_check
      _
    $region47: #{tpu_custom_call.1} parent=1 // pred_check_branch
      %119 = sbr.rel (0) target = $region49
    $region48: #{tpu_custom_call.1} parent=1 // pred_region
      %s121 = ssub.s32 1024, 1024
      %122 = vsyncadd [#allocation15], %s121
      %s123 = sshll.u32 [#allocation14], 4
      %s124 = int_to_ptr.vmem [resolvable:$true] %s123
      %129 = dma.hbm_to_vmem [thread:$0]  %s11, 1024, %s124, [#allocation15], 64, 64, 4
    $region49: #{tpu_custom_call.1} parent=1 // pred_fallthru
      _
    // Predicated region
    $region50: #{tpu_custom_call.1} parent=1 // pred_check
      _
    $region51: #{tpu_custom_call.1} parent=1 // pred_check_branch
      %131 = sbr.rel (0) target = $region53
    $region52: #{tpu_custom_call.1} parent=1 // pred_region
      _
    $region53: #{tpu_custom_call.1} parent=1 // pred_fallthru
      _
    // Predicated region
    $region54: #{tpu_custom_call.1} parent=1 // pred_check
      _
    $region55: #{tpu_custom_call.1} parent=1 // pred_check_branch
      %133 = sbr.rel (0) target = $region57
    $region56: #{tpu_custom_call.1} parent=1 // pred_region
      %s135 = ssub.s32 1024, 1024
      %136 = vsyncadd [#allocation15], %s135
      %s137 = sshll.u32 [#allocation16], 4
      %s138 = int_to_ptr.vmem [resolvable:$true] %s137
      %143 = dma.hbm_to_vmem [thread:$0]  %s13, 1024, %s138, [#allocation15], 64, 64, 4
    $region57: #{tpu_custom_call.1} parent=1 // pred_fallthru
      _
    // Predicated region
    $region58: #{tpu_custom_call.1} parent=1 // pred_check
      _
    $region59: #{tpu_custom_call.1} parent=1 // pred_check_branch
      %145 = sbr.rel (0) target = $region61
    $region60: #{tpu_custom_call.1} parent=1 // pred_region
      _
    $region61: #{tpu_custom_call.1} parent=1 // pred_fallthru
      _
    // Predicated region
    $region62: #{tpu_custom_call.1} parent=1 // pred_check
      _
    $region63: #{tpu_custom_call.1} parent=1 // pred_check_branch
      %147 = sbr.rel (0) target = $region65
    $region64: #{tpu_custom_call.1} parent=1 // pred_region
      %148 = dma.done [#allocation3], 128
    $region65: #{tpu_custom_call.1} parent=1 // pred_fallthru
      _
    // Predicated region
    $region66: #{tpu_custom_call.1} parent=1 // pred_check
      _
    $region67: #{tpu_custom_call.1} parent=1 // pred_check_branch
      %150 = sbr.rel (0) target = $region69
    $region68: #{tpu_custom_call.1} parent=1 // pred_region
      %151 = dma.done [#allocation6], 128
    $region69: #{tpu_custom_call.1} parent=1 // pred_fallthru
      _
    // Predicated region
    $region70: #{tpu_custom_call.1} parent=1 // pred_check
      _
    $region71: #{tpu_custom_call.1} parent=1 // pred_check_branch
      %153 = sbr.rel (0) target = $region73
    $region72: #{tpu_custom_call.1} parent=1 // pred_region
      %154 = dma.done [#allocation6], 1024
    $region73: #{tpu_custom_call.1} parent=1 // pred_fallthru
      _
    // Predicated region
    $region74: #{tpu_custom_call.1} parent=1 // pred_check
      _
    $region75: #{tpu_custom_call.1} parent=1 // pred_check_branch
      %156 = sbr.rel (0) target = $region77
    $region76: #{tpu_custom_call.1} parent=1 // pred_region
      %157 = dma.done [#allocation9], 1024
    $region77: #{tpu_custom_call.1} parent=1 // pred_fallthru
      _
    // Predicated region
    $region78: #{tpu_custom_call.1} parent=1 // pred_check
      _
    $region79: #{tpu_custom_call.1} parent=1 // pred_check_branch
      %159 = sbr.rel (0) target = $region81
    $region80: #{tpu_custom_call.1} parent=1 // pred_region
      %160 = dma.done [#allocation9], 1024
    $region81: #{tpu_custom_call.1} parent=1 // pred_fallthru
      _
    // Predicated region
    $region82: #{tpu_custom_call.1} parent=1 // pred_check
      _
    $region83: #{tpu_custom_call.1} parent=1 // pred_check_branch
      %162 = sbr.rel (0) target = $region85
    $region84: #{tpu_custom_call.1} parent=1 // pred_region
      %163 = dma.done [#allocation12], 1024
    $region85: #{tpu_custom_call.1} parent=1 // pred_fallthru
      _
    // Predicated region
    $region86: #{tpu_custom_call.1} parent=1 // pred_check
      _
    $region87: #{tpu_custom_call.1} parent=1 // pred_check_branch
      %165 = sbr.rel (0) target = $region89
    $region88: #{tpu_custom_call.1} parent=1 // pred_region
      %166 = dma.done [#allocation12], 1024
    $region89: #{tpu_custom_call.1} parent=1 // pred_fallthru
      _
    // Predicated region
    $region90: #{tpu_custom_call.1} parent=1 // pred_check
      _
    $region91: #{tpu_custom_call.1} parent=1 // pred_check_branch
      %168 = sbr.rel (0) target = $region93
    $region92: #{tpu_custom_call.1} parent=1 // pred_region
      %169 = dma.done [#allocation15], 1024
    $region93: #{tpu_custom_call.1} parent=1 // pred_fallthru
      _
    // Predicated region
    $region94: #{tpu_custom_call.1} parent=1 // pred_check
      _
    $region95: #{tpu_custom_call.1} parent=1 // pred_check_branch
      %171 = sbr.rel (0) target = $region97
    $region96: #{tpu_custom_call.1} parent=1 // pred_region
      %172 = dma.done [#allocation15], 1024
    $region97: #{tpu_custom_call.1} parent=1 // pred_fallthru
      _
    %v174 = vld [vmem:[#allocation2] sm:$0xff]
    %v175 = vpack.c.bf16 %v174, %v174
    %v176 = vld [vmem:[#allocation7] sm:$0xf]
    %v177 = vld [vmem:[#allocation7 + $0x4] sm:$0xf]
    %v178 = vld [vmem:[#allocation7 + $0x8] sm:$0xf]
    %v179 = vld [vmem:[#allocation7 + $0xc] sm:$0xf]
    %v180 = vld [vmem:[#allocation7 + $0x10] sm:$0xf]
    %v181 = vld [vmem:[#allocation7 + $0x14] sm:$0xf]
    %v182 = vld [vmem:[#allocation7 + $0x18] sm:$0xf]
    %v183 = vld [vmem:[#allocation7 + $0x1c] sm:$0xf]
    %v184 = vld [vmem:[#allocation7 + $0x20] sm:$0xf]
    %v185 = vld [vmem:[#allocation7 + $0x24] sm:$0xf]
    %v186 = vld [vmem:[#allocation7 + $0x28] sm:$0xf]
    %v187 = vld [vmem:[#allocation7 + $0x2c] sm:$0xf]
    %v188 = vld [vmem:[#allocation7 + $0x30] sm:$0xf]
    %v189 = vld [vmem:[#allocation7 + $0x34] sm:$0xf]
    %v190 = vld [vmem:[#allocation7 + $0x38] sm:$0xf]
    %v191 = vld [vmem:[#allocation7 + $0x3c] sm:$0xf]
    %v192 = vld [vmem:[%s3] sm:$0x1]
    %v194 = vlaneseq
    %v195 = vshrl.u32 %v194, 7
    %v196 = vsub.s32 0, %v195
    %v197 = vrot.slane %v192, %v196
    %v215 = vunpack.c.l.b16 %v176
    %v216 = vunpack.c.l.b16 %v177
    %v217 = vunpack.c.l.b16 %v178
    %v218 = vunpack.c.l.b16 %v179
    %v219 = vunpack.c.l.b16 %v180
    %v220 = vunpack.c.l.b16 %v181
    %v221 = vunpack.c.l.b16 %v182
    %v222 = vunpack.c.l.b16 %v183
    %v223 = vunpack.c.l.b16 %v184
    %v224 = vunpack.c.l.b16 %v185
    %v225 = vunpack.c.l.b16 %v186
    %v226 = vunpack.c.l.b16 %v187
    %v227 = vunpack.c.l.b16 %v188
    %v228 = vunpack.c.l.b16 %v189
    %v229 = vunpack.c.l.b16 %v190
    %v230 = vunpack.c.l.b16 %v191
    %v231 = vpack.c.b16 %v216, %v215
    %v232 = vpack.c.b16 %v218, %v217
    %v233 = vpack.c.b16 %v220, %v219
    %v234 = vpack.c.b16 %v222, %v221
    %v235 = vpack.c.b16 %v224, %v223
    %v236 = vpack.c.b16 %v226, %v225
    %v237 = vpack.c.b16 %v228, %v227
    %v238 = vpack.c.b16 %v230, %v229
    %247 = vmatprep.subr.bf16.mxu0 0
    %248 = vmatpush1.bf16.msra.mxu0 %v231
    %249 = vmatprep.subr.bf16.mxu0 0
    %250 = vmatpush1.bf16.msra.mxu0 %v232
    %251 = vmatprep.subr.bf16.mxu0 0
    %252 = vmatpush1.bf16.msra.mxu0 %v233
    %253 = vmatprep.subr.bf16.mxu0 0
    %254 = vmatpush1.bf16.msra.mxu0 %v234
    %255 = vmatprep.subr.bf16.mxu0 0
    %256 = vmatpush1.bf16.msra.mxu0 %v235
    %257 = vmatprep.subr.bf16.mxu0 0
    %258 = vmatpush1.bf16.msra.mxu0 %v236
    %259 = vmatprep.subr.bf16.mxu0 0
    %260 = vmatpush1.bf16.msra.mxu0 %v237
    %261 = vmatprep.subr.bf16.mxu0 0
    %262 = vmatpush1.bf16.msra.mxu0 %v238
    %263 = vmatprep.subr.bf16.mxu0 0
    %264 = vmatpush1.bf16.msra.mxu0 0
    %265 = vmatprep.subr.bf16.mxu0 0
    %266 = vmatpush1.bf16.msra.mxu0 0
    %267 = vmatprep.subr.bf16.mxu0 0
    %268 = vmatpush1.bf16.msra.mxu0 0
    %269 = vmatprep.subr.bf16.mxu0 0
    %270 = vmatpush1.bf16.msra.mxu0 0
    %271 = vmatprep.subr.bf16.mxu0 0
    %272 = vmatpush1.bf16.msra.mxu0 0
    %273 = vmatprep.subr.bf16.mxu0 0
    %274 = vmatpush1.bf16.msra.mxu0 0
    %275 = vmatprep.subr.bf16.mxu0 0
    %276 = vmatpush1.bf16.msra.mxu0 0
    %277 = vmatprep.subr.bf16.mxu0 0
    %278 = vmatpush1.bf16.msra.mxu0 0
    %279 = vmatprep.mubr.bf16.mxu0 0
    %280 = vmatmul.mubr.bf16.gmra.mrb[0].mxu0 %v175
    %v281 = vpop.f32.mrb[0].mxu0
    %v282 = vadd.f32 %v197, %v281
    %v283 = vpop.f32.mrb[0].mxu0
    %v284 = vpop.f32.mrb[0].mxu0
    %v285 = vpop.f32.mrb[0].mxu0
    %286 = vdwg.mxu0
    %v287 = vmax.f32 %v282, 0.0
    %v288 = vpack.c.bf16 %v287, %v287
    %v289 = vld [vmem:[#allocation8] sm:$0xf]
    %v290 = vld [vmem:[#allocation8 + $0x4] sm:$0xf]
    %v291 = vld [vmem:[#allocation8 + $0x8] sm:$0xf]
    %v292 = vld [vmem:[#allocation8 + $0xc] sm:$0xf]
    %v293 = vld [vmem:[#allocation8 + $0x10] sm:$0xf]
    %v294 = vld [vmem:[#allocation8 + $0x14] sm:$0xf]
    %v295 = vld [vmem:[#allocation8 + $0x18] sm:$0xf]
    %v296 = vld [vmem:[#allocation8 + $0x1c] sm:$0xf]
    %v297 = vld [vmem:[#allocation8 + $0x20] sm:$0xf]
    %v298 = vld [vmem:[#allocation8 + $0x24] sm:$0xf]
    %v299 = vld [vmem:[#allocation8 + $0x28] sm:$0xf]
    %v300 = vld [vmem:[#allocation8 + $0x2c] sm:$0xf]
    %v301 = vld [vmem:[#allocation8 + $0x30] sm:$0xf]
    %v302 = vld [vmem:[#allocation8 + $0x34] sm:$0xf]
    %v303 = vld [vmem:[#allocation8 + $0x38] sm:$0xf]
    %v304 = vld [vmem:[#allocation8 + $0x3c] sm:$0xf]
    %v305 = vld [vmem:[%s5] sm:$0x1]
    %v307 = vlaneseq
    %v308 = vshrl.u32 %v307, 7
    %v309 = vsub.s32 0, %v308
    %v310 = vrot.slane %v305, %v309
    %v328 = vunpack.c.l.b16 %v289
    %v329 = vunpack.c.l.b16 %v290
    %v330 = vunpack.c.l.b16 %v291
    %v331 = vunpack.c.l.b16 %v292
    %v332 = vunpack.c.l.b16 %v293
    %v333 = vunpack.c.l.b16 %v294
    %v334 = vunpack.c.l.b16 %v295
    %v335 = vunpack.c.l.b16 %v296
    %v336 = vunpack.c.l.b16 %v297
    %v337 = vunpack.c.l.b16 %v298
    %v338 = vunpack.c.l.b16 %v299
    %v339 = vunpack.c.l.b16 %v300
    %v340 = vunpack.c.l.b16 %v301
    %v341 = vunpack.c.l.b16 %v302
    %v342 = vunpack.c.l.b16 %v303
    %v343 = vunpack.c.l.b16 %v304
    %v344 = vpack.c.b16 %v329, %v328
    %v345 = vpack.c.b16 %v331, %v330
    %v346 = vpack.c.b16 %v333, %v332
    %v347 = vpack.c.b16 %v335, %v334
    %v348 = vpack.c.b16 %v337, %v336
    %v349 = vpack.c.b16 %v339, %v338
    %v350 = vpack.c.b16 %v341, %v340
    %v351 = vpack.c.b16 %v343, %v342
    %360 = vmatprep.subr.bf16.mxu0 0
    %361 = vmatpush1.bf16.msra.mxu0 %v344
    %362 = vmatprep.subr.bf16.mxu0 0
    %363 = vmatpush1.bf16.msra.mxu0 %v345
    %364 = vmatprep.subr.bf16.mxu0 0
    %365 = vmatpush1.bf16.msra.mxu0 %v346
    %366 = vmatprep.subr.bf16.mxu0 0
    %367 = vmatpush1.bf16.msra.mxu0 %v347
    %368 = vmatprep.subr.bf16.mxu0 0
    %369 = vmatpush1.bf16.msra.mxu0 %v348
    %370 = vmatprep.subr.bf16.mxu0 0
    %371 = vmatpush1.bf16.msra.mxu0 %v349
    %372 = vmatprep.subr.bf16.mxu0 0
    %373 = vmatpush1.bf16.msra.mxu0 %v350
    %374 = vmatprep.subr.bf16.mxu0 0
    %375 = vmatpush1.bf16.msra.mxu0 %v351
    %376 = vmatprep.subr.bf16.mxu0 0
    %377 = vmatpush1.bf16.msra.mxu0 0
    %378 = vmatprep.subr.bf16.mxu0 0
    %379 = vmatpush1.bf16.msra.mxu0 0
    %380 = vmatprep.subr.bf16.mxu0 0
    %381 = vmatpush1.bf16.msra.mxu0 0
    %382 = vmatprep.subr.bf16.mxu0 0
    %383 = vmatpush1.bf16.msra.mxu0 0
    %384 = vmatprep.subr.bf16.mxu0 0
    %385 = vmatpush1.bf16.msra.mxu0 0
    %386 = vmatprep.subr.bf16.mxu0 0
    %387 = vmatpush1.bf16.msra.mxu0 0
    %388 = vmatprep.subr.bf16.mxu0 0
    %389 = vmatpush1.bf16.msra.mxu0 0
    %390 = vmatprep.subr.bf16.mxu0 0
    %391 = vmatpush1.bf16.msra.mxu0 0
    %392 = vmatprep.mubr.bf16.mxu0 0
    %393 = vmatmul.mubr.bf16.gmra.mrb[0].mxu0 %v288
    %v394 = vpop.f32.mrb[0].mxu0
    %v395 = vadd.f32 %v310, %v394
    %v396 = vpop.f32.mrb[0].mxu0
    %v397 = vpop.f32.mrb[0].mxu0
    %v398 = vpop.f32.mrb[0].mxu0
    %399 = vdwg.mxu0
    %v400 = vmax.f32 %v395, 0.0
    %v401 = vpack.c.bf16 %v400, %v400
    %v402 = vld [vmem:[#allocation10] sm:$0xf]
    %v403 = vld [vmem:[#allocation10 + $0x4] sm:$0xf]
    %v404 = vld [vmem:[#allocation10 + $0x8] sm:$0xf]
    %v405 = vld [vmem:[#allocation10 + $0xc] sm:$0xf]
    %v406 = vld [vmem:[#allocation10 + $0x10] sm:$0xf]
    %v407 = vld [vmem:[#allocation10 + $0x14] sm:$0xf]
    %v408 = vld [vmem:[#allocation10 + $0x18] sm:$0xf]
    %v409 = vld [vmem:[#allocation10 + $0x1c] sm:$0xf]
    %v410 = vld [vmem:[#allocation10 + $0x20] sm:$0xf]
    %v411 = vld [vmem:[#allocation10 + $0x24] sm:$0xf]
    %v412 = vld [vmem:[#allocation10 + $0x28] sm:$0xf]
    %v413 = vld [vmem:[#allocation10 + $0x2c] sm:$0xf]
    %v414 = vld [vmem:[#allocation10 + $0x30] sm:$0xf]
    %v415 = vld [vmem:[#allocation10 + $0x34] sm:$0xf]
    %v416 = vld [vmem:[#allocation10 + $0x38] sm:$0xf]
    %v417 = vld [vmem:[#allocation10 + $0x3c] sm:$0xf]
    %v418 = vld [vmem:[%s7] sm:$0x1]
    %v420 = vlaneseq
    %v421 = vshrl.u32 %v420, 7
    %v422 = vsub.s32 0, %v421
    %v423 = vrot.slane %v418, %v422
    %v441 = vunpack.c.l.b16 %v402
    %v442 = vunpack.c.l.b16 %v403
    %v443 = vunpack.c.l.b16 %v404
    %v444 = vunpack.c.l.b16 %v405
    %v445 = vunpack.c.l.b16 %v406
    %v446 = vunpack.c.l.b16 %v407
    %v447 = vunpack.c.l.b16 %v408
    %v448 = vunpack.c.l.b16 %v409
    %v449 = vunpack.c.l.b16 %v410
    %v450 = vunpack.c.l.b16 %v411
    %v451 = vunpack.c.l.b16 %v412
    %v452 = vunpack.c.l.b16 %v413
    %v453 = vunpack.c.l.b16 %v414
    %v454 = vunpack.c.l.b16 %v415
    %v455 = vunpack.c.l.b16 %v416
    %v456 = vunpack.c.l.b16 %v417
    %v457 = vpack.c.b16 %v442, %v441
    %v458 = vpack.c.b16 %v444, %v443
    %v459 = vpack.c.b16 %v446, %v445
    %v460 = vpack.c.b16 %v448, %v447
    %v461 = vpack.c.b16 %v450, %v449
    %v462 = vpack.c.b16 %v452, %v451
    %v463 = vpack.c.b16 %v454, %v453
    %v464 = vpack.c.b16 %v456, %v455
    %473 = vmatprep.subr.bf16.mxu0 0
    %474 = vmatpush1.bf16.msra.mxu0 %v457
    %475 = vmatprep.subr.bf16.mxu0 0
    %476 = vmatpush1.bf16.msra.mxu0 %v458
    %477 = vmatprep.subr.bf16.mxu0 0
    %478 = vmatpush1.bf16.msra.mxu0 %v459
    %479 = vmatprep.subr.bf16.mxu0 0
    %480 = vmatpush1.bf16.msra.mxu0 %v460
    %481 = vmatprep.subr.bf16.mxu0 0
    %482 = vmatpush1.bf16.msra.mxu0 %v461
    %483 = vmatprep.subr.bf16.mxu0 0
    %484 = vmatpush1.bf16.msra.mxu0 %v462
    %485 = vmatprep.subr.bf16.mxu0 0
    %486 = vmatpush1.bf16.msra.mxu0 %v463
    %487 = vmatprep.subr.bf16.mxu0 0
    %488 = vmatpush1.bf16.msra.mxu0 %v464
    %489 = vmatprep.subr.bf16.mxu0 0
    %490 = vmatpush1.bf16.msra.mxu0 0
    %491 = vmatprep.subr.bf16.mxu0 0
    %492 = vmatpush1.bf16.msra.mxu0 0
    %493 = vmatprep.subr.bf16.mxu0 0
    %494 = vmatpush1.bf16.msra.mxu0 0
    %495 = vmatprep.subr.bf16.mxu0 0
    %496 = vmatpush1.bf16.msra.mxu0 0
    %497 = vmatprep.subr.bf16.mxu0 0
    %498 = vmatpush1.bf16.msra.mxu0 0
    %499 = vmatprep.subr.bf16.mxu0 0
    %500 = vmatpush1.bf16.msra.mxu0 0
    %501 = vmatprep.subr.bf16.mxu0 0
    %502 = vmatpush1.bf16.msra.mxu0 0
    %503 = vmatprep.subr.bf16.mxu0 0
    %504 = vmatpush1.bf16.msra.mxu0 0
    %505 = vmatprep.mubr.bf16.mxu0 0
    %506 = vmatmul.mubr.bf16.gmra.mrb[0].mxu0 %v401
    %v507 = vpop.f32.mrb[0].mxu0
    %v508 = vadd.f32 %v423, %v507
    %v509 = vpop.f32.mrb[0].mxu0
    %v510 = vpop.f32.mrb[0].mxu0
    %v511 = vpop.f32.mrb[0].mxu0
    %512 = vdwg.mxu0
    %v513 = vtanh.pop %v508
    %v514 = vmul.f32 %v513, 2.0
    %515 = vst [vmem:[#allocation17] sm:$0xff] %v514
    %v516 = vld [vmem:[#allocation11] sm:$0xf]
    %v517 = vld [vmem:[#allocation11 + $0x4] sm:$0xf]
    %v518 = vld [vmem:[#allocation11 + $0x8] sm:$0xf]
    %v519 = vld [vmem:[#allocation11 + $0xc] sm:$0xf]
    %v520 = vld [vmem:[#allocation11 + $0x10] sm:$0xf]
    %v521 = vld [vmem:[#allocation11 + $0x14] sm:$0xf]
    %v522 = vld [vmem:[#allocation11 + $0x18] sm:$0xf]
    %v523 = vld [vmem:[#allocation11 + $0x1c] sm:$0xf]
    %v524 = vld [vmem:[#allocation11 + $0x20] sm:$0xf]
    %v525 = vld [vmem:[#allocation11 + $0x24] sm:$0xf]
    %v526 = vld [vmem:[#allocation11 + $0x28] sm:$0xf]
    %v527 = vld [vmem:[#allocation11 + $0x2c] sm:$0xf]
    %v528 = vld [vmem:[#allocation11 + $0x30] sm:$0xf]
    %v529 = vld [vmem:[#allocation11 + $0x34] sm:$0xf]
    %v530 = vld [vmem:[#allocation11 + $0x38] sm:$0xf]
    %v531 = vld [vmem:[#allocation11 + $0x3c] sm:$0xf]
    %v532 = vpack.c.bf16 %v514, %v514
    %v533 = vld [vmem:[#allocation13] sm:$0xf]
    %v534 = vld [vmem:[#allocation13 + $0x4] sm:$0xf]
    %v535 = vld [vmem:[#allocation13 + $0x8] sm:$0xf]
    %v536 = vld [vmem:[#allocation13 + $0xc] sm:$0xf]
    %v537 = vld [vmem:[#allocation13 + $0x10] sm:$0xf]
    %v538 = vld [vmem:[#allocation13 + $0x14] sm:$0xf]
    %v539 = vld [vmem:[#allocation13 + $0x18] sm:$0xf]
    %v540 = vld [vmem:[#allocation13 + $0x1c] sm:$0xf]
    %v541 = vld [vmem:[#allocation13 + $0x20] sm:$0xf]
    %v542 = vld [vmem:[#allocation13 + $0x24] sm:$0xf]
    %v543 = vld [vmem:[#allocation13 + $0x28] sm:$0xf]
    %v544 = vld [vmem:[#allocation13 + $0x2c] sm:$0xf]
    %v545 = vld [vmem:[#allocation13 + $0x30] sm:$0xf]
    %v546 = vld [vmem:[#allocation13 + $0x34] sm:$0xf]
    %v547 = vld [vmem:[#allocation13 + $0x38] sm:$0xf]
    %v548 = vld [vmem:[#allocation13 + $0x3c] sm:$0xf]
    %v565 = vunpack.c.l.b16 %v533
    %v566 = vunpack.c.l.b16 %v534
    %v567 = vunpack.c.l.b16 %v535
    %v568 = vunpack.c.l.b16 %v536
    %v569 = vunpack.c.l.b16 %v537
    %v570 = vunpack.c.l.b16 %v538
    %v571 = vunpack.c.l.b16 %v539
    %v572 = vunpack.c.l.b16 %v540
    %v573 = vunpack.c.l.b16 %v541
    %v574 = vunpack.c.l.b16 %v542
    %v575 = vunpack.c.l.b16 %v543
    %v576 = vunpack.c.l.b16 %v544
    %v577 = vunpack.c.l.b16 %v545
    %v578 = vunpack.c.l.b16 %v546
    %v579 = vunpack.c.l.b16 %v547
    %v580 = vunpack.c.l.b16 %v548
    %v581 = vpack.c.b16 %v566, %v565
    %v582 = vpack.c.b16 %v568, %v567
    %v583 = vpack.c.b16 %v570, %v569
    %v584 = vpack.c.b16 %v572, %v571
    %v585 = vpack.c.b16 %v574, %v573
    %v586 = vpack.c.b16 %v576, %v575
    %v587 = vpack.c.b16 %v578, %v577
    %v588 = vpack.c.b16 %v580, %v579
    %597 = vmatprep.subr.bf16.mxu0 0
    %598 = vmatpush1.bf16.msra.mxu0 %v581
    %599 = vmatprep.subr.bf16.mxu0 0
    %600 = vmatpush1.bf16.msra.mxu0 %v582
    %601 = vmatprep.subr.bf16.mxu0 0
    %602 = vmatpush1.bf16.msra.mxu0 %v583
    %603 = vmatprep.subr.bf16.mxu0 0
    %604 = vmatpush1.bf16.msra.mxu0 %v584
    %605 = vmatprep.subr.bf16.mxu0 0
    %606 = vmatpush1.bf16.msra.mxu0 %v585
    %607 = vmatprep.subr.bf16.mxu0 0
    %608 = vmatpush1.bf16.msra.mxu0 %v586
    %609 = vmatprep.subr.bf16.mxu0 0
    %610 = vmatpush1.bf16.msra.mxu0 %v587
    %611 = vmatprep.subr.bf16.mxu0 0
    %612 = vmatpush1.bf16.msra.mxu0 %v588
    %613 = vmatprep.subr.bf16.mxu0 0
    %614 = vmatpush1.bf16.msra.mxu0 0
    %615 = vmatprep.subr.bf16.mxu0 0
    %616 = vmatpush1.bf16.msra.mxu0 0
    %617 = vmatprep.subr.bf16.mxu0 0
    %618 = vmatpush1.bf16.msra.mxu0 0
    %619 = vmatprep.subr.bf16.mxu0 0
    %620 = vmatpush1.bf16.msra.mxu0 0
    %621 = vmatprep.subr.bf16.mxu0 0
    %622 = vmatpush1.bf16.msra.mxu0 0
    %623 = vmatprep.subr.bf16.mxu0 0
    %624 = vmatpush1.bf16.msra.mxu0 0
    %625 = vmatprep.subr.bf16.mxu0 0
    %626 = vmatpush1.bf16.msra.mxu0 0
    %627 = vmatprep.subr.bf16.mxu0 0
    %628 = vmatpush1.bf16.msra.mxu0 0
    %629 = vmatprep.mubr.bf16.mxu0 0
    %630 = vmatmul.mubr.bf16.gmra.mrb[0].mxu0 %v532
    %v631 = vpop.f32.mrb[0].mxu0
    %v632 = vadd.f32 0.0, %v631
    %v633 = vpop.f32.mrb[0].mxu0
    %v634 = vpop.f32.mrb[0].mxu0
    %v635 = vpop.f32.mrb[0].mxu0
    %636 = vdwg.mxu0
    %v653 = vunpack.c.l.b16 %v516
    %v654 = vunpack.c.l.b16 %v517
    %v655 = vunpack.c.l.b16 %v518
    %v656 = vunpack.c.l.b16 %v519
    %v657 = vunpack.c.l.b16 %v520
    %v658 = vunpack.c.l.b16 %v521
    %v659 = vunpack.c.l.b16 %v522
    %v660 = vunpack.c.l.b16 %v523
    %v661 = vunpack.c.l.b16 %v524
    %v662 = vunpack.c.l.b16 %v525
    %v663 = vunpack.c.l.b16 %v526
    %v664 = vunpack.c.l.b16 %v527
    %v665 = vunpack.c.l.b16 %v528
    %v666 = vunpack.c.l.b16 %v529
    %v667 = vunpack.c.l.b16 %v530
    %v668 = vunpack.c.l.b16 %v531
    %v669 = vpack.c.b16 %v654, %v653
    %v670 = vpack.c.b16 %v656, %v655
    %v671 = vpack.c.b16 %v658, %v657
    %v672 = vpack.c.b16 %v660, %v659
    %v673 = vpack.c.b16 %v662, %v661
    %v674 = vpack.c.b16 %v664, %v663
    %v675 = vpack.c.b16 %v666, %v665
    %v676 = vpack.c.b16 %v668, %v667
    %685 = vmatprep.subr.bf16.mxu0 0
    %686 = vmatpush1.bf16.msra.mxu0 %v669
    %687 = vmatprep.subr.bf16.mxu0 0
    %688 = vmatpush1.bf16.msra.mxu0 %v670
    %689 = vmatprep.subr.bf16.mxu0 0
    %690 = vmatpush1.bf16.msra.mxu0 %v671
    %691 = vmatprep.subr.bf16.mxu0 0
    %692 = vmatpush1.bf16.msra.mxu0 %v672
    %693 = vmatprep.subr.bf16.mxu0 0
    %694 = vmatpush1.bf16.msra.mxu0 %v673
    %695 = vmatprep.subr.bf16.mxu0 0
    %696 = vmatpush1.bf16.msra.mxu0 %v674
    %697 = vmatprep.subr.bf16.mxu0 0
    %698 = vmatpush1.bf16.msra.mxu0 %v675
    %699 = vmatprep.subr.bf16.mxu0 0
    %700 = vmatpush1.bf16.msra.mxu0 %v676
    %701 = vmatprep.subr.bf16.mxu0 0
    %702 = vmatpush1.bf16.msra.mxu0 0
    %703 = vmatprep.subr.bf16.mxu0 0
    %704 = vmatpush1.bf16.msra.mxu0 0
    %705 = vmatprep.subr.bf16.mxu0 0
    %706 = vmatpush1.bf16.msra.mxu0 0
    %707 = vmatprep.subr.bf16.mxu0 0
    %708 = vmatpush1.bf16.msra.mxu0 0
    %709 = vmatprep.subr.bf16.mxu0 0
    %710 = vmatpush1.bf16.msra.mxu0 0
    %711 = vmatprep.subr.bf16.mxu0 0
    %712 = vmatpush1.bf16.msra.mxu0 0
    %713 = vmatprep.subr.bf16.mxu0 0
    %714 = vmatpush1.bf16.msra.mxu0 0
    %715 = vmatprep.subr.bf16.mxu0 0
    %716 = vmatpush1.bf16.msra.mxu0 0
    %717 = vmatprep.mubr.bf16.mxu0 0
    %718 = vmatmul.mubr.bf16.gmra.mrb[0].mxu0 %v175
    %v719 = vpop.f32.mrb[0].mxu0
    %v720 = vadd.f32 %v632, %v719
    %v721 = vpop.f32.mrb[0].mxu0
    %v722 = vpop.f32.mrb[0].mxu0
    %v723 = vpop.f32.mrb[0].mxu0
    %724 = vdwg.mxu0
    %v725 = vld [vmem:[%s10] sm:$0x1]
    %v727 = vlaneseq
    %v728 = vshrl.u32 %v727, 7
    %v729 = vsub.s32 0, %v728
    %v730 = vrot.slane %v725, %v729
    %v732 = vadd.f32 %v720, %v730
    %v733 = vmax.f32 %v732, 0.0
    %v734 = vpack.c.bf16 %v733, %v733
    %v735 = vld [vmem:[#allocation14] sm:$0xf]
    %v736 = vld [vmem:[#allocation14 + $0x4] sm:$0xf]
    %v737 = vld [vmem:[#allocation14 + $0x8] sm:$0xf]
    %v738 = vld [vmem:[#allocation14 + $0xc] sm:$0xf]
    %v739 = vld [vmem:[#allocation14 + $0x10] sm:$0xf]
    %v740 = vld [vmem:[#allocation14 + $0x14] sm:$0xf]
    %v741 = vld [vmem:[#allocation14 + $0x18] sm:$0xf]
    %v742 = vld [vmem:[#allocation14 + $0x1c] sm:$0xf]
    %v743 = vld [vmem:[#allocation14 + $0x20] sm:$0xf]
    %v744 = vld [vmem:[#allocation14 + $0x24] sm:$0xf]
    %v745 = vld [vmem:[#allocation14 + $0x28] sm:$0xf]
    %v746 = vld [vmem:[#allocation14 + $0x2c] sm:$0xf]
    %v747 = vld [vmem:[#allocation14 + $0x30] sm:$0xf]
    %v748 = vld [vmem:[#allocation14 + $0x34] sm:$0xf]
    %v749 = vld [vmem:[#allocation14 + $0x38] sm:$0xf]
    %v750 = vld [vmem:[#allocation14 + $0x3c] sm:$0xf]
    %v751 = vld [vmem:[%s12] sm:$0x1]
    %v753 = vlaneseq
    %v754 = vshrl.u32 %v753, 7
    %v755 = vsub.s32 0, %v754
    %v756 = vrot.slane %v751, %v755
    %v774 = vunpack.c.l.b16 %v735
    %v775 = vunpack.c.l.b16 %v736
    %v776 = vunpack.c.l.b16 %v737
    %v777 = vunpack.c.l.b16 %v738
    %v778 = vunpack.c.l.b16 %v739
    %v779 = vunpack.c.l.b16 %v740
    %v780 = vunpack.c.l.b16 %v741
    %v781 = vunpack.c.l.b16 %v742
    %v782 = vunpack.c.l.b16 %v743
    %v783 = vunpack.c.l.b16 %v744
    %v784 = vunpack.c.l.b16 %v745
    %v785 = vunpack.c.l.b16 %v746
    %v786 = vunpack.c.l.b16 %v747
    %v787 = vunpack.c.l.b16 %v748
    %v788 = vunpack.c.l.b16 %v749
    %v789 = vunpack.c.l.b16 %v750
    %v790 = vpack.c.b16 %v775, %v774
    %v791 = vpack.c.b16 %v777, %v776
    %v792 = vpack.c.b16 %v779, %v778
    %v793 = vpack.c.b16 %v781, %v780
    %v794 = vpack.c.b16 %v783, %v782
    %v795 = vpack.c.b16 %v785, %v784
    %v796 = vpack.c.b16 %v787, %v786
    %v797 = vpack.c.b16 %v789, %v788
    %806 = vmatprep.subr.bf16.mxu0 0
    %807 = vmatpush1.bf16.msra.mxu0 %v790
    %808 = vmatprep.subr.bf16.mxu0 0
    %809 = vmatpush1.bf16.msra.mxu0 %v791
    %810 = vmatprep.subr.bf16.mxu0 0
    %811 = vmatpush1.bf16.msra.mxu0 %v792
    %812 = vmatprep.subr.bf16.mxu0 0
    %813 = vmatpush1.bf16.msra.mxu0 %v793
    %814 = vmatprep.subr.bf16.mxu0 0
    %815 = vmatpush1.bf16.msra.mxu0 %v794
    %816 = vmatprep.subr.bf16.mxu0 0
    %817 = vmatpush1.bf16.msra.mxu0 %v795
    %818 = vmatprep.subr.bf16.mxu0 0
    %819 = vmatpush1.bf16.msra.mxu0 %v796
    %820 = vmatprep.subr.bf16.mxu0 0
    %821 = vmatpush1.bf16.msra.mxu0 %v797
    %822 = vmatprep.subr.bf16.mxu0 0
    %823 = vmatpush1.bf16.msra.mxu0 0
    %824 = vmatprep.subr.bf16.mxu0 0
    %825 = vmatpush1.bf16.msra.mxu0 0
    %826 = vmatprep.subr.bf16.mxu0 0
    %827 = vmatpush1.bf16.msra.mxu0 0
    %828 = vmatprep.subr.bf16.mxu0 0
    %829 = vmatpush1.bf16.msra.mxu0 0
    %830 = vmatprep.subr.bf16.mxu0 0
    %831 = vmatpush1.bf16.msra.mxu0 0
    %832 = vmatprep.subr.bf16.mxu0 0
    %833 = vmatpush1.bf16.msra.mxu0 0
    %834 = vmatprep.subr.bf16.mxu0 0
    %835 = vmatpush1.bf16.msra.mxu0 0
    %836 = vmatprep.subr.bf16.mxu0 0
    %837 = vmatpush1.bf16.msra.mxu0 0
    %838 = vmatprep.mubr.bf16.mxu0 0
    %839 = vmatmul.mubr.bf16.gmra.mrb[0].mxu0 %v734
    %v840 = vpop.f32.mrb[0].mxu0
    %v841 = vadd.f32 %v756, %v840
    %v842 = vpop.f32.mrb[0].mxu0
    %v843 = vpop.f32.mrb[0].mxu0
    %v844 = vpop.f32.mrb[0].mxu0
    %845 = vdwg.mxu0
    %v846 = vmax.f32 %v841, 0.0
    %v847 = vpack.c.bf16 %v846, %v846
    %v848 = vld [vmem:[#allocation16] sm:$0xf]
    %v849 = vld [vmem:[#allocation16 + $0x4] sm:$0xf]
    %v850 = vld [vmem:[#allocation16 + $0x8] sm:$0xf]
    %v851 = vld [vmem:[#allocation16 + $0xc] sm:$0xf]
    %v852 = vld [vmem:[#allocation16 + $0x10] sm:$0xf]
    %v853 = vld [vmem:[#allocation16 + $0x14] sm:$0xf]
    %v854 = vld [vmem:[#allocation16 + $0x18] sm:$0xf]
    %v855 = vld [vmem:[#allocation16 + $0x1c] sm:$0xf]
    %v856 = vld [vmem:[#allocation16 + $0x20] sm:$0xf]
    %v857 = vld [vmem:[#allocation16 + $0x24] sm:$0xf]
    %v858 = vld [vmem:[#allocation16 + $0x28] sm:$0xf]
    %v859 = vld [vmem:[#allocation16 + $0x2c] sm:$0xf]
    %v860 = vld [vmem:[#allocation16 + $0x30] sm:$0xf]
    %v861 = vld [vmem:[#allocation16 + $0x34] sm:$0xf]
    %v862 = vld [vmem:[#allocation16 + $0x38] sm:$0xf]
    %v863 = vld [vmem:[#allocation16 + $0x3c] sm:$0xf]
    %v864 = vld [vmem:[%s14] sm:$0x1]
    %v866 = vlaneseq
    %v867 = vshrl.u32 %v866, 7
    %v868 = vsub.s32 0, %v867
    %v869 = vrot.slane %v864, %v868
    %v887 = vunpack.c.l.b16 %v848
    %v888 = vunpack.c.l.b16 %v849
    %v889 = vunpack.c.l.b16 %v850
    %v890 = vunpack.c.l.b16 %v851
    %v891 = vunpack.c.l.b16 %v852
    %v892 = vunpack.c.l.b16 %v853
    %v893 = vunpack.c.l.b16 %v854
    %v894 = vunpack.c.l.b16 %v855
    %v895 = vunpack.c.l.b16 %v856
    %v896 = vunpack.c.l.b16 %v857
    %v897 = vunpack.c.l.b16 %v858
    %v898 = vunpack.c.l.b16 %v859
    %v899 = vunpack.c.l.b16 %v860
    %v900 = vunpack.c.l.b16 %v861
    %v901 = vunpack.c.l.b16 %v862
    %v902 = vunpack.c.l.b16 %v863
    %v903 = vpack.c.b16 %v888, %v887
    %v904 = vpack.c.b16 %v890, %v889
    %v905 = vpack.c.b16 %v892, %v891
    %v906 = vpack.c.b16 %v894, %v893
    %v907 = vpack.c.b16 %v896, %v895
    %v908 = vpack.c.b16 %v898, %v897
    %v909 = vpack.c.b16 %v900, %v899
    %v910 = vpack.c.b16 %v902, %v901
    %919 = vmatprep.subr.bf16.mxu0 0
    %920 = vmatpush1.bf16.msra.mxu0 %v903
    %921 = vmatprep.subr.bf16.mxu0 0
    %922 = vmatpush1.bf16.msra.mxu0 %v904
    %923 = vmatprep.subr.bf16.mxu0 0
    %924 = vmatpush1.bf16.msra.mxu0 %v905
    %925 = vmatprep.subr.bf16.mxu0 0
    %926 = vmatpush1.bf16.msra.mxu0 %v906
    %927 = vmatprep.subr.bf16.mxu0 0
    %928 = vmatpush1.bf16.msra.mxu0 %v907
    %929 = vmatprep.subr.bf16.mxu0 0
    %930 = vmatpush1.bf16.msra.mxu0 %v908
    %931 = vmatprep.subr.bf16.mxu0 0
    %932 = vmatpush1.bf16.msra.mxu0 %v909
    %933 = vmatprep.subr.bf16.mxu0 0
    %934 = vmatpush1.bf16.msra.mxu0 %v910
    %935 = vmatprep.subr.bf16.mxu0 0
    %936 = vmatpush1.bf16.msra.mxu0 0
    %937 = vmatprep.subr.bf16.mxu0 0
    %938 = vmatpush1.bf16.msra.mxu0 0
    %939 = vmatprep.subr.bf16.mxu0 0
    %940 = vmatpush1.bf16.msra.mxu0 0
    %941 = vmatprep.subr.bf16.mxu0 0
    %942 = vmatpush1.bf16.msra.mxu0 0
    %943 = vmatprep.subr.bf16.mxu0 0
    %944 = vmatpush1.bf16.msra.mxu0 0
    %945 = vmatprep.subr.bf16.mxu0 0
    %946 = vmatpush1.bf16.msra.mxu0 0
    %947 = vmatprep.subr.bf16.mxu0 0
    %948 = vmatpush1.bf16.msra.mxu0 0
    %949 = vmatprep.subr.bf16.mxu0 0
    %950 = vmatpush1.bf16.msra.mxu0 0
    %951 = vmatprep.mubr.bf16.mxu0 0
    %952 = vmatmul.mubr.bf16.gmra.mrb[0].mxu0 %v847
    %v953 = vpop.f32.mrb[0].mxu0
    %v954 = vadd.f32 %v869, %v953
    %v955 = vpop.f32.mrb[0].mxu0
    %v956 = vpop.f32.mrb[0].mxu0
    %v957 = vpop.f32.mrb[0].mxu0
    %958 = vdwg.mxu0
    %959 = vst [vmem:[#allocation20] sm:$0xff] %v954
    %v960 = vld [vmem:[#allocation5] sm:$0xff]
    %v961 = vld [vmem:[#allocation11] sm:$0xf]
    %v962 = vld [vmem:[#allocation11 + $0x4] sm:$0xf]
    %v963 = vld [vmem:[#allocation11 + $0x8] sm:$0xf]
    %v964 = vld [vmem:[#allocation11 + $0xc] sm:$0xf]
    %v965 = vld [vmem:[#allocation11 + $0x10] sm:$0xf]
    %v966 = vld [vmem:[#allocation11 + $0x14] sm:$0xf]
    %v967 = vld [vmem:[#allocation11 + $0x18] sm:$0xf]
    %v968 = vld [vmem:[#allocation11 + $0x1c] sm:$0xf]
    %v969 = vld [vmem:[#allocation11 + $0x20] sm:$0xf]
    %v970 = vld [vmem:[#allocation11 + $0x24] sm:$0xf]
    %v971 = vld [vmem:[#allocation11 + $0x28] sm:$0xf]
    %v972 = vld [vmem:[#allocation11 + $0x2c] sm:$0xf]
    %v973 = vld [vmem:[#allocation11 + $0x30] sm:$0xf]
    %v974 = vld [vmem:[#allocation11 + $0x34] sm:$0xf]
    %v975 = vld [vmem:[#allocation11 + $0x38] sm:$0xf]
    %v976 = vld [vmem:[#allocation11 + $0x3c] sm:$0xf]
    %v977 = vpack.c.bf16 %v960, %v960
    %v978 = vld [vmem:[#allocation13] sm:$0xf]
    %v979 = vld [vmem:[#allocation13 + $0x4] sm:$0xf]
    %v980 = vld [vmem:[#allocation13 + $0x8] sm:$0xf]
    %v981 = vld [vmem:[#allocation13 + $0xc] sm:$0xf]
    %v982 = vld [vmem:[#allocation13 + $0x10] sm:$0xf]
    %v983 = vld [vmem:[#allocation13 + $0x14] sm:$0xf]
    %v984 = vld [vmem:[#allocation13 + $0x18] sm:$0xf]
    %v985 = vld [vmem:[#allocation13 + $0x1c] sm:$0xf]
    %v986 = vld [vmem:[#allocation13 + $0x20] sm:$0xf]
    %v987 = vld [vmem:[#allocation13 + $0x24] sm:$0xf]
    %v988 = vld [vmem:[#allocation13 + $0x28] sm:$0xf]
    %v989 = vld [vmem:[#allocation13 + $0x2c] sm:$0xf]
    %v990 = vld [vmem:[#allocation13 + $0x30] sm:$0xf]
    %v991 = vld [vmem:[#allocation13 + $0x34] sm:$0xf]
    %v992 = vld [vmem:[#allocation13 + $0x38] sm:$0xf]
    %v993 = vld [vmem:[#allocation13 + $0x3c] sm:$0xf]
    %v1010 = vunpack.c.l.b16 %v978
    %v1011 = vunpack.c.l.b16 %v979
    %v1012 = vunpack.c.l.b16 %v980
    %v1013 = vunpack.c.l.b16 %v981
    %v1014 = vunpack.c.l.b16 %v982
    %v1015 = vunpack.c.l.b16 %v983
    %v1016 = vunpack.c.l.b16 %v984
    %v1017 = vunpack.c.l.b16 %v985
    %v1018 = vunpack.c.l.b16 %v986
    %v1019 = vunpack.c.l.b16 %v987
    %v1020 = vunpack.c.l.b16 %v988
    %v1021 = vunpack.c.l.b16 %v989
    %v1022 = vunpack.c.l.b16 %v990
    %v1023 = vunpack.c.l.b16 %v991
    %v1024 = vunpack.c.l.b16 %v992
    %v1025 = vunpack.c.l.b16 %v993
    %v1026 = vpack.c.b16 %v1011, %v1010
    %v1027 = vpack.c.b16 %v1013, %v1012
    %v1028 = vpack.c.b16 %v1015, %v1014
    %v1029 = vpack.c.b16 %v1017, %v1016
    %v1030 = vpack.c.b16 %v1019, %v1018
    %v1031 = vpack.c.b16 %v1021, %v1020
    %v1032 = vpack.c.b16 %v1023, %v1022
    %v1033 = vpack.c.b16 %v1025, %v1024
    %1042 = vmatprep.subr.bf16.mxu0 0
    %1043 = vmatpush1.bf16.msra.mxu0 %v1026
    %1044 = vmatprep.subr.bf16.mxu0 0
    %1045 = vmatpush1.bf16.msra.mxu0 %v1027
    %1046 = vmatprep.subr.bf16.mxu0 0
    %1047 = vmatpush1.bf16.msra.mxu0 %v1028
    %1048 = vmatprep.subr.bf16.mxu0 0
    %1049 = vmatpush1.bf16.msra.mxu0 %v1029
    %1050 = vmatprep.subr.bf16.mxu0 0
    %1051 = vmatpush1.bf16.msra.mxu0 %v1030
    %1052 = vmatprep.subr.bf16.mxu0 0
    %1053 = vmatpush1.bf16.msra.mxu0 %v1031
    %1054 = vmatprep.subr.bf16.mxu0 0
    %1055 = vmatpush1.bf16.msra.mxu0 %v1032
    %1056 = vmatprep.subr.bf16.mxu0 0
    %1057 = vmatpush1.bf16.msra.mxu0 %v1033
    %1058 = vmatprep.subr.bf16.mxu0 0
    %1059 = vmatpush1.bf16.msra.mxu0 0
    %1060 = vmatprep.subr.bf16.mxu0 0
    %1061 = vmatpush1.bf16.msra.mxu0 0
    %1062 = vmatprep.subr.bf16.mxu0 0
    %1063 = vmatpush1.bf16.msra.mxu0 0
    %1064 = vmatprep.subr.bf16.mxu0 0
    %1065 = vmatpush1.bf16.msra.mxu0 0
    %1066 = vmatprep.subr.bf16.mxu0 0
    %1067 = vmatpush1.bf16.msra.mxu0 0
    %1068 = vmatprep.subr.bf16.mxu0 0
    %1069 = vmatpush1.bf16.msra.mxu0 0
    %1070 = vmatprep.subr.bf16.mxu0 0
    %1071 = vmatpush1.bf16.msra.mxu0 0
    %1072 = vmatprep.subr.bf16.mxu0 0
    %1073 = vmatpush1.bf16.msra.mxu0 0
    %1074 = vmatprep.mubr.bf16.mxu0 0
    %1075 = vmatmul.mubr.bf16.gmra.mrb[0].mxu0 %v977
    %v1076 = vpop.f32.mrb[0].mxu0
    %v1077 = vadd.f32 0.0, %v1076
    %v1078 = vpop.f32.mrb[0].mxu0
    %v1079 = vpop.f32.mrb[0].mxu0
    %v1080 = vpop.f32.mrb[0].mxu0
    %1081 = vdwg.mxu0
    %v1098 = vunpack.c.l.b16 %v961
    %v1099 = vunpack.c.l.b16 %v962
    %v1100 = vunpack.c.l.b16 %v963
    %v1101 = vunpack.c.l.b16 %v964
    %v1102 = vunpack.c.l.b16 %v965
    %v1103 = vunpack.c.l.b16 %v966
    %v1104 = vunpack.c.l.b16 %v967
    %v1105 = vunpack.c.l.b16 %v968
    %v1106 = vunpack.c.l.b16 %v969
    %v1107 = vunpack.c.l.b16 %v970
    %v1108 = vunpack.c.l.b16 %v971
    %v1109 = vunpack.c.l.b16 %v972
    %v1110 = vunpack.c.l.b16 %v973
    %v1111 = vunpack.c.l.b16 %v974
    %v1112 = vunpack.c.l.b16 %v975
    %v1113 = vunpack.c.l.b16 %v976
    %v1114 = vpack.c.b16 %v1099, %v1098
    %v1115 = vpack.c.b16 %v1101, %v1100
    %v1116 = vpack.c.b16 %v1103, %v1102
    %v1117 = vpack.c.b16 %v1105, %v1104
    %v1118 = vpack.c.b16 %v1107, %v1106
    %v1119 = vpack.c.b16 %v1109, %v1108
    %v1120 = vpack.c.b16 %v1111, %v1110
    %v1121 = vpack.c.b16 %v1113, %v1112
    %1130 = vmatprep.subr.bf16.mxu0 0
    %1131 = vmatpush1.bf16.msra.mxu0 %v1114
    %1132 = vmatprep.subr.bf16.mxu0 0
    %1133 = vmatpush1.bf16.msra.mxu0 %v1115
    %1134 = vmatprep.subr.bf16.mxu0 0
    %1135 = vmatpush1.bf16.msra.mxu0 %v1116
    %1136 = vmatprep.subr.bf16.mxu0 0
    %1137 = vmatpush1.bf16.msra.mxu0 %v1117
    %1138 = vmatprep.subr.bf16.mxu0 0
    %1139 = vmatpush1.bf16.msra.mxu0 %v1118
    %1140 = vmatprep.subr.bf16.mxu0 0
    %1141 = vmatpush1.bf16.msra.mxu0 %v1119
    %1142 = vmatprep.subr.bf16.mxu0 0
    %1143 = vmatpush1.bf16.msra.mxu0 %v1120
    %1144 = vmatprep.subr.bf16.mxu0 0
    %1145 = vmatpush1.bf16.msra.mxu0 %v1121
    %1146 = vmatprep.subr.bf16.mxu0 0
    %1147 = vmatpush1.bf16.msra.mxu0 0
    %1148 = vmatprep.subr.bf16.mxu0 0
    %1149 = vmatpush1.bf16.msra.mxu0 0
    %1150 = vmatprep.subr.bf16.mxu0 0
    %1151 = vmatpush1.bf16.msra.mxu0 0
    %1152 = vmatprep.subr.bf16.mxu0 0
    %1153 = vmatpush1.bf16.msra.mxu0 0
    %1154 = vmatprep.subr.bf16.mxu0 0
    %1155 = vmatpush1.bf16.msra.mxu0 0
    %1156 = vmatprep.subr.bf16.mxu0 0
    %1157 = vmatpush1.bf16.msra.mxu0 0
    %1158 = vmatprep.subr.bf16.mxu0 0
    %1159 = vmatpush1.bf16.msra.mxu0 0
    %1160 = vmatprep.subr.bf16.mxu0 0
    %1161 = vmatpush1.bf16.msra.mxu0 0
    %1162 = vmatprep.mubr.bf16.mxu0 0
    %1163 = vmatmul.mubr.bf16.gmra.mrb[0].mxu0 %v175
    %v1164 = vpop.f32.mrb[0].mxu0
    %v1165 = vadd.f32 %v1077, %v1164
    %v1166 = vpop.f32.mrb[0].mxu0
    %v1167 = vpop.f32.mrb[0].mxu0
    %v1168 = vpop.f32.mrb[0].mxu0
    %1169 = vdwg.mxu0
    %v1170 = vld [vmem:[%s10] sm:$0x1]
    %v1172 = vlaneseq
    %v1173 = vshrl.u32 %v1172, 7
    %v1174 = vsub.s32 0, %v1173
    %v1175 = vrot.slane %v1170, %v1174
    %v1177 = vadd.f32 %v1165, %v1175
    %v1178 = vmax.f32 %v1177, 0.0
    %v1179 = vpack.c.bf16 %v1178, %v1178
    %v1180 = vld [vmem:[#allocation14] sm:$0xf]
    %v1181 = vld [vmem:[#allocation14 + $0x4] sm:$0xf]
    %v1182 = vld [vmem:[#allocation14 + $0x8] sm:$0xf]
    %v1183 = vld [vmem:[#allocation14 + $0xc] sm:$0xf]
    %v1184 = vld [vmem:[#allocation14 + $0x10] sm:$0xf]
    %v1185 = vld [vmem:[#allocation14 + $0x14] sm:$0xf]
    %v1186 = vld [vmem:[#allocation14 + $0x18] sm:$0xf]
    %v1187 = vld [vmem:[#allocation14 + $0x1c] sm:$0xf]
    %v1188 = vld [vmem:[#allocation14 + $0x20] sm:$0xf]
    %v1189 = vld [vmem:[#allocation14 + $0x24] sm:$0xf]
    %v1190 = vld [vmem:[#allocation14 + $0x28] sm:$0xf]
    %v1191 = vld [vmem:[#allocation14 + $0x2c] sm:$0xf]
    %v1192 = vld [vmem:[#allocation14 + $0x30] sm:$0xf]
    %v1193 = vld [vmem:[#allocation14 + $0x34] sm:$0xf]
    %v1194 = vld [vmem:[#allocation14 + $0x38] sm:$0xf]
    %v1195 = vld [vmem:[#allocation14 + $0x3c] sm:$0xf]
    %v1196 = vld [vmem:[%s12] sm:$0x1]
    %v1198 = vlaneseq
    %v1199 = vshrl.u32 %v1198, 7
    %v1200 = vsub.s32 0, %v1199
    %v1201 = vrot.slane %v1196, %v1200
    %v1219 = vunpack.c.l.b16 %v1180
    %v1220 = vunpack.c.l.b16 %v1181
    %v1221 = vunpack.c.l.b16 %v1182
    %v1222 = vunpack.c.l.b16 %v1183
    %v1223 = vunpack.c.l.b16 %v1184
    %v1224 = vunpack.c.l.b16 %v1185
    %v1225 = vunpack.c.l.b16 %v1186
    %v1226 = vunpack.c.l.b16 %v1187
    %v1227 = vunpack.c.l.b16 %v1188
    %v1228 = vunpack.c.l.b16 %v1189
    %v1229 = vunpack.c.l.b16 %v1190
    %v1230 = vunpack.c.l.b16 %v1191
    %v1231 = vunpack.c.l.b16 %v1192
    %v1232 = vunpack.c.l.b16 %v1193
    %v1233 = vunpack.c.l.b16 %v1194
    %v1234 = vunpack.c.l.b16 %v1195
    %v1235 = vpack.c.b16 %v1220, %v1219
    %v1236 = vpack.c.b16 %v1222, %v1221
    %v1237 = vpack.c.b16 %v1224, %v1223
    %v1238 = vpack.c.b16 %v1226, %v1225
    %v1239 = vpack.c.b16 %v1228, %v1227
    %v1240 = vpack.c.b16 %v1230, %v1229
    %v1241 = vpack.c.b16 %v1232, %v1231
    %v1242 = vpack.c.b16 %v1234, %v1233
    %1251 = vmatprep.subr.bf16.mxu0 0
    %1252 = vmatpush1.bf16.msra.mxu0 %v1235
    %1253 = vmatprep.subr.bf16.mxu0 0
    %1254 = vmatpush1.bf16.msra.mxu0 %v1236
    %1255 = vmatprep.subr.bf16.mxu0 0
    %1256 = vmatpush1.bf16.msra.mxu0 %v1237
    %1257 = vmatprep.subr.bf16.mxu0 0
    %1258 = vmatpush1.bf16.msra.mxu0 %v1238
    %1259 = vmatprep.subr.bf16.mxu0 0
    %1260 = vmatpush1.bf16.msra.mxu0 %v1239
    %1261 = vmatprep.subr.bf16.mxu0 0
    %1262 = vmatpush1.bf16.msra.mxu0 %v1240
    %1263 = vmatprep.subr.bf16.mxu0 0
    %1264 = vmatpush1.bf16.msra.mxu0 %v1241
    %1265 = vmatprep.subr.bf16.mxu0 0
    %1266 = vmatpush1.bf16.msra.mxu0 %v1242
    %1267 = vmatprep.subr.bf16.mxu0 0
    %1268 = vmatpush1.bf16.msra.mxu0 0
    %1269 = vmatprep.subr.bf16.mxu0 0
    %1270 = vmatpush1.bf16.msra.mxu0 0
    %1271 = vmatprep.subr.bf16.mxu0 0
    %1272 = vmatpush1.bf16.msra.mxu0 0
    %1273 = vmatprep.subr.bf16.mxu0 0
    %1274 = vmatpush1.bf16.msra.mxu0 0
    %1275 = vmatprep.subr.bf16.mxu0 0
    %1276 = vmatpush1.bf16.msra.mxu0 0
    %1277 = vmatprep.subr.bf16.mxu0 0
    %1278 = vmatpush1.bf16.msra.mxu0 0
    %1279 = vmatprep.subr.bf16.mxu0 0
    %1280 = vmatpush1.bf16.msra.mxu0 0
    %1281 = vmatprep.subr.bf16.mxu0 0
    %1282 = vmatpush1.bf16.msra.mxu0 0
    %1283 = vmatprep.mubr.bf16.mxu0 0
    %1284 = vmatmul.mubr.bf16.gmra.mrb[0].mxu0 %v1179
    %v1285 = vpop.f32.mrb[0].mxu0
    %v1286 = vadd.f32 %v1201, %v1285
    %v1287 = vpop.f32.mrb[0].mxu0
    %v1288 = vpop.f32.mrb[0].mxu0
    %v1289 = vpop.f32.mrb[0].mxu0
    %1290 = vdwg.mxu0
    %v1291 = vmax.f32 %v1286, 0.0
    %v1292 = vpack.c.bf16 %v1291, %v1291
    %v1293 = vld [vmem:[#allocation16] sm:$0xf]
    %v1294 = vld [vmem:[#allocation16 + $0x4] sm:$0xf]
    %v1295 = vld [vmem:[#allocation16 + $0x8] sm:$0xf]
    %v1296 = vld [vmem:[#allocation16 + $0xc] sm:$0xf]
    %v1297 = vld [vmem:[#allocation16 + $0x10] sm:$0xf]
    %v1298 = vld [vmem:[#allocation16 + $0x14] sm:$0xf]
    %v1299 = vld [vmem:[#allocation16 + $0x18] sm:$0xf]
    %v1300 = vld [vmem:[#allocation16 + $0x1c] sm:$0xf]
    %v1301 = vld [vmem:[#allocation16 + $0x20] sm:$0xf]
    %v1302 = vld [vmem:[#allocation16 + $0x24] sm:$0xf]
    %v1303 = vld [vmem:[#allocation16 + $0x28] sm:$0xf]
    %v1304 = vld [vmem:[#allocation16 + $0x2c] sm:$0xf]
    %v1305 = vld [vmem:[#allocation16 + $0x30] sm:$0xf]
    %v1306 = vld [vmem:[#allocation16 + $0x34] sm:$0xf]
    %v1307 = vld [vmem:[#allocation16 + $0x38] sm:$0xf]
    %v1308 = vld [vmem:[#allocation16 + $0x3c] sm:$0xf]
    %v1309 = vld [vmem:[%s14] sm:$0x1]
    %v1311 = vlaneseq
    %v1312 = vshrl.u32 %v1311, 7
    %v1313 = vsub.s32 0, %v1312
    %v1314 = vrot.slane %v1309, %v1313
    %v1332 = vunpack.c.l.b16 %v1293
    %v1333 = vunpack.c.l.b16 %v1294
    %v1334 = vunpack.c.l.b16 %v1295
    %v1335 = vunpack.c.l.b16 %v1296
    %v1336 = vunpack.c.l.b16 %v1297
    %v1337 = vunpack.c.l.b16 %v1298
    %v1338 = vunpack.c.l.b16 %v1299
    %v1339 = vunpack.c.l.b16 %v1300
    %v1340 = vunpack.c.l.b16 %v1301
    %v1341 = vunpack.c.l.b16 %v1302
    %v1342 = vunpack.c.l.b16 %v1303
    %v1343 = vunpack.c.l.b16 %v1304
    %v1344 = vunpack.c.l.b16 %v1305
    %v1345 = vunpack.c.l.b16 %v1306
    %v1346 = vunpack.c.l.b16 %v1307
    %v1347 = vunpack.c.l.b16 %v1308
    %v1348 = vpack.c.b16 %v1333, %v1332
    %v1349 = vpack.c.b16 %v1335, %v1334
    %v1350 = vpack.c.b16 %v1337, %v1336
    %v1351 = vpack.c.b16 %v1339, %v1338
    %v1352 = vpack.c.b16 %v1341, %v1340
    %v1353 = vpack.c.b16 %v1343, %v1342
    %v1354 = vpack.c.b16 %v1345, %v1344
    %v1355 = vpack.c.b16 %v1347, %v1346
    %1364 = vmatprep.subr.bf16.mxu0 0
    %1365 = vmatpush1.bf16.msra.mxu0 %v1348
    %1366 = vmatprep.subr.bf16.mxu0 0
    %1367 = vmatpush1.bf16.msra.mxu0 %v1349
    %1368 = vmatprep.subr.bf16.mxu0 0
    %1369 = vmatpush1.bf16.msra.mxu0 %v1350
    %1370 = vmatprep.subr.bf16.mxu0 0
    %1371 = vmatpush1.bf16.msra.mxu0 %v1351
    %1372 = vmatprep.subr.bf16.mxu0 0
    %1373 = vmatpush1.bf16.msra.mxu0 %v1352
    %1374 = vmatprep.subr.bf16.mxu0 0
    %1375 = vmatpush1.bf16.msra.mxu0 %v1353
    %1376 = vmatprep.subr.bf16.mxu0 0
    %1377 = vmatpush1.bf16.msra.mxu0 %v1354
    %1378 = vmatprep.subr.bf16.mxu0 0
    %1379 = vmatpush1.bf16.msra.mxu0 %v1355
    %1380 = vmatprep.subr.bf16.mxu0 0
    %1381 = vmatpush1.bf16.msra.mxu0 0
    %1382 = vmatprep.subr.bf16.mxu0 0
    %1383 = vmatpush1.bf16.msra.mxu0 0
    %1384 = vmatprep.subr.bf16.mxu0 0
    %1385 = vmatpush1.bf16.msra.mxu0 0
    %1386 = vmatprep.subr.bf16.mxu0 0
    %1387 = vmatpush1.bf16.msra.mxu0 0
    %1388 = vmatprep.subr.bf16.mxu0 0
    %1389 = vmatpush1.bf16.msra.mxu0 0
    %1390 = vmatprep.subr.bf16.mxu0 0
    %1391 = vmatpush1.bf16.msra.mxu0 0
    %1392 = vmatprep.subr.bf16.mxu0 0
    %1393 = vmatpush1.bf16.msra.mxu0 0
    %1394 = vmatprep.subr.bf16.mxu0 0
    %1395 = vmatpush1.bf16.msra.mxu0 0
    %1396 = vmatprep.mubr.bf16.mxu0 0
    %1397 = vmatmul.mubr.bf16.gmra.mrb[0].mxu0 %v1292
    %v1398 = vpop.f32.mrb[0].mxu0
    %v1399 = vadd.f32 %v1314, %v1398
    %v1400 = vpop.f32.mrb[0].mxu0
    %v1401 = vpop.f32.mrb[0].mxu0
    %v1402 = vpop.f32.mrb[0].mxu0
    %1403 = vdwg.mxu0
    %1404 = vst [vmem:[#allocation18] sm:$0xff] %v1399
    // Predicated region
    $region98: #{tpu_custom_call.1} parent=1 // pred_check
      _
    $region99: #{tpu_custom_call.1} parent=1 // pred_check_branch
      %1406 = sbr.rel (0) target = $region101
    $region100: #{tpu_custom_call.1} parent=1 // pred_region
      %s1408 = ssub.s32 128, 128
      %1409 = vsyncadd [#allocation4], %s1408
      %s1411 = sshll.u32 [#allocation17], 4
      %s1412 = int_to_ptr.vmem [resolvable:$true] %s1411
      %1414 = dma.vmem_to_hbm [thread:$0]  %s1412, 128, %s15, [#allocation4]
    $region101: #{tpu_custom_call.1} parent=1 // pred_fallthru
      _
    // Predicated region
    $region102: #{tpu_custom_call.1} parent=1 // pred_check
      _
    $region103: #{tpu_custom_call.1} parent=1 // pred_check_branch
      %1416 = sbr.rel (0) target = $region105
    $region104: #{tpu_custom_call.1} parent=1 // pred_region
      %s1418 = ssub.s32 128, 128
      %1419 = vsyncadd [#allocation19], %s1418
      %s1421 = sshll.u32 [#allocation18], 4
      %s1422 = int_to_ptr.vmem [resolvable:$true] %s1421
      %1424 = dma.vmem_to_hbm [thread:$0]  %s1422, 128, %s16, [#allocation19]
    $region105: #{tpu_custom_call.1} parent=1 // pred_fallthru
      _
    // Predicated region
    $region106: #{tpu_custom_call.1} parent=1 // pred_check
      _
    $region107: #{tpu_custom_call.1} parent=1 // pred_check_branch
      %1426 = sbr.rel (0) target = $region109
    $region108: #{tpu_custom_call.1} parent=1 // pred_region
      %s1428 = ssub.s32 128, 128
      %1429 = vsyncadd [#allocation19], %s1428
      %s1431 = sshll.u32 [#allocation20], 4
      %s1432 = int_to_ptr.vmem [resolvable:$true] %s1431
      %1434 = dma.vmem_to_hbm [thread:$0]  %s1432, 128, %s17, [#allocation19]
    $region109: #{tpu_custom_call.1} parent=1 // pred_fallthru
      _
    // Predicated region
    $region110: #{tpu_custom_call.1} parent=1 // pred_check
      _
    $region111: #{tpu_custom_call.1} parent=1 // pred_check_branch
      %1436 = sbr.rel (0) target = $region113
    $region112: #{tpu_custom_call.1} parent=1 // pred_region
      %1437 = dma.done [#allocation4], 128
    $region113: #{tpu_custom_call.1} parent=1 // pred_fallthru
      _
    // Predicated region
    $region114: #{tpu_custom_call.1} parent=1 // pred_check
      _
    $region115: #{tpu_custom_call.1} parent=1 // pred_check_branch
      %1439 = sbr.rel (0) target = $region117
    $region116: #{tpu_custom_call.1} parent=1 // pred_region
      %1440 = dma.done [#allocation19], 128
    $region117: #{tpu_custom_call.1} parent=1 // pred_fallthru
      _
    // Predicated region
    $region118: #{tpu_custom_call.1} parent=1 // pred_check
      _
    $region119: #{tpu_custom_call.1} parent=1 // pred_check_branch
      %1442 = sbr.rel (0) target = $region121
    $region120: #{tpu_custom_call.1} parent=1 // pred_region
      %1443 = dma.done [#allocation19], 128
    $region121: #{tpu_custom_call.1} parent=1 // pred_fallthru
      _
    %1444 = vsyncpa [#allocation3], 1
    %1445 = vsyncpa [#allocation6], 1
    %1446 = vsyncpa [#allocation9], 1
    %1447 = vsyncpa [#allocation12], 1
    %1448 = vsyncpa [#allocation15], 1
    %1449 = vsyncpa [#allocation4], 1
    %1450 = vsyncpa [#allocation19], 1

</llo_original>
